<compile_context>
chip_gen: v7x
topology: tpu7x:2x2x1
jax: 0.10.0
libtpu: 0.0.40
codegen_flags: <defaults>
</compile_context>

<pallas_src>
import jax
import jax.numpy as jnp
from jax import lax
from jax.experimental import pallas as pl
from jax.experimental.pallas import tpu as pltpu

CHUNK = 8          # timesteps per inner chunk == f32 sublane tile height


# --------------------------------------------------------------------------
# Fused (input projection + LSTM recurrence) kernel.
# --------------------------------------------------------------------------
def _lstm_kernel(x_ref, wc_ref, bc_ref, whh_ref, h0_ref, c0_ref,
                 out_ref, hT_ref, cT_ref, h_scr, c_scr):
    ti = pl.program_id(1)                      # time-block index (sequential)
    Bb, Tb, _ = x_ref.shape
    H = h_scr.shape[-1]

    @pl.when(ti == 0)
    def _():                                   # fresh sequence for this batch block
        h_scr[...] = h0_ref[...]
        c_scr[...] = c0_ref[...]

    def lstm_step(gates, c):
        # PyTorch LSTMCell gate order (i, f, g, o); all elementwise math in f32
        # (EUP transcendentals sit in their own bundle slot, v5e-safe).
        i = jax.nn.sigmoid(gates[:, 0 * H:1 * H])
        f = jax.nn.sigmoid(gates[:, 1 * H:2 * H])
        g = jnp.tanh(gates[:, 2 * H:3 * H])
        o = jax.nn.sigmoid(gates[:, 3 * H:4 * H])
        c = f * c + i * g
        h = o * jnp.tanh(c)
        return h, c

    def step_gates(x_t, h):
        # Fused input + recurrent projections: bf16 MXU operands, f32 accumulate.
        # Weight refs are read per use, never hoisted into vregs for the block.
        return (jnp.dot(x_t.astype(jnp.bfloat16), wc_ref[...],
                        preferred_element_type=jnp.float32)
                + jnp.dot(h.astype(jnp.bfloat16), whh_ref[...],
                          preferred_element_type=jnp.float32)
                + bc_ref[...])

    n_chunks = Tb // CHUNK

    def chunk_body(k, carry):
        h, c = carry
        t0 = pl.multiple_of(k * CHUNK, CHUNK)          # sublane-aligned offset
        xc = x_ref[:, pl.ds(t0, CHUNK), :]             # (Bb, 8, D) chunk load
        hs = []
        for j in range(CHUNK):                         # statically unrolled 8 steps
            h, c = lstm_step(step_gates(xc[:, j, :], h), c)
            hs.append(h)
        # One dense, sublane-aligned (Bb, 8, H) store per chunk instead of
        # 8 single-sublane masked stores.
        out_ref[:, pl.ds(t0, CHUNK), :] = (
            jnp.stack(hs, axis=1).astype(out_ref.dtype))
        return h, c

    h = h_scr[...]
    c = c_scr[...]
    if n_chunks > 0:
        h, c = lax.fori_loop(0, n_chunks, chunk_body, (h, c),
                             unroll=True if n_chunks <= 8 else 2)

    # Tail timesteps (Tb % 8), if any: per-step projection + store.
    for t in range(n_chunks * CHUNK, Tb):
        h, c = lstm_step(step_gates(x_ref[:, t, :], h), c)
        out_ref[:, t, :] = h.astype(out_ref.dtype)

    h_scr[...] = h
    c_scr[...] = c

    @pl.when(ti == pl.num_programs(1) - 1)             # write finals only once
    def _():
        hT_ref[...] = h.astype(hT_ref.dtype)
        cT_ref[...] = c.astype(cT_ref.dtype)


# --------------------------------------------------------------------------
# Block-size selection (VMEM-budget aware, per review) + pallas_call wrapper.
# --------------------------------------------------------------------------
def _vmem_budget_bytes():
    """Per-core VMEM capacity (v5e/v6e: 128 MiB, v7x: 64 MiB)."""
    try:
        return int(pltpu.get_tpu_info().vmem_capacity_bytes)
    except Exception:
        return 64 * 1024 * 1024          # conservative fallback (v7x per-core)


def _pick_batch_block(B):
    """Whole batch when small; a divisor block for large B so the leading
    "parallel" grid axis can be split across TensorCores (v7x megacore)."""
    if B < 16:
        return B
    for bb in (128, 64, 32, 16, 8):
        if B % bb == 0:
            return bb
    return B


def _pick_time_block(T, cap):
    """Largest multiple-of-8 divisor of T that is <= cap, else the whole T."""
    cap = min(T, max(int(cap), CHUNK))
    for tb in range(cap - cap % CHUNK, CHUNK - 1, -CHUNK):
        if T % tb == 0:
            return tb
    return T


def lstm_forward(states, w_comb, b_comb, w_hh, h0, c0):
    """states (B,T,D) f32, w_comb (D,4H) bf16, b_comb (1,4H) f32,
    w_hh (H,4H) bf16, h0/c0 (B,H) f32 -> (out (B,T,H), h_T, c_T), all f32."""
    B, T, D = states.shape
    H = h0.shape[-1]
    G = 4 * H

    Bb = _pick_batch_block(B)
    budget = _vmem_budget_bytes()
    # Bytes per timestep held in VMEM by the double-buffered states/output
    # blocks, plus fixed weights / carries; keep well under the budget.
    bytes_per_t = 2 * Bb * (D + H) * 4
    fixed = 2 * (D * G + H * G) + 4 * G + 8 * Bb * H * 4
    cap_t = (budget // 3 - fixed) // max(bytes_per_t, 1)
    Tb = _pick_time_block(T, cap_t)
    grid = (B // Bb, T // Tb)

    grid_spec = pltpu.PrefetchScalarGridSpec(
        num_scalar_prefetch=0,
        grid=grid,
        in_specs=[
            pl.BlockSpec((Bb, Tb, D), lambda bi, ti: (bi, ti, 0)),   # states
            pl.BlockSpec((D, G), lambda bi, ti: (0, 0)),             # W_comb (bf16)
            pl.BlockSpec((1, G), lambda bi, ti: (0, 0)),             # b_comb (f32)
            pl.BlockSpec((H, G), lambda bi, ti: (0, 0)),             # W_hh   (bf16)
            pl.BlockSpec((Bb, H), lambda bi, ti: (bi, 0)),           # h0
            pl.BlockSpec((Bb, H), lambda bi, ti: (bi, 0)),           # c0
        ],
        out_specs=[
            pl.BlockSpec((Bb, Tb, H), lambda bi, ti: (bi, ti, 0)),   # embeddings
            pl.BlockSpec((Bb, H), lambda bi, ti: (bi, 0)),           # final h
            pl.BlockSpec((Bb, H), lambda bi, ti: (bi, 0)),           # final c
        ],
        scratch_shapes=[
            pltpu.VMEM((Bb, H), jnp.float32),                        # carried h
            pltpu.VMEM((Bb, H), jnp.float32),                        # carried c
        ],
    )

    out_shapes = (
        jax.ShapeDtypeStruct((B, T, H), jnp.float32),
        jax.ShapeDtypeStruct((B, H), jnp.float32),
        jax.ShapeDtypeStruct((B, H), jnp.float32),
    )

    return pl.pallas_call(
        _lstm_kernel,
        grid_spec=grid_spec,
        out_shape=out_shapes,
        compiler_params=pltpu.CompilerParams(
            dimension_semantics=("parallel", "arbitrary"),
            vmem_limit_bytes=int(budget * 3 // 4),
        ),
    )(states, w_comb, b_comb, w_hh, h0, c0)


# --------------------------------------------------------------------------
# RecurrentStateEmbedder.forward equivalent.
# --------------------------------------------------------------------------
def recurrent_state_embedder(states, params, hidden_state=None):
    """states: (B, T, state_dim) float32 -> (embeddings, (h_T, c_T))."""
    B, T, _ = states.shape
    H = params["w_hh_t"].shape[0]

    # Exact algebraic fold of LinearEmbedder + LSTM input projection (f32),
    # bf16-cast once for the MXU (reused by every grid step / timestep):
    #   gates_x = states @ (W_e^T W_ih^T) + (b_e W_ih^T + b_ih + b_hh)
    w_comb = jnp.dot(params["w_embed_t"], params["w_ih_t"])              # (D, 4H)
    b_comb = (jnp.dot(params["b_embed"], params["w_ih_t"])
              + params["b_ih"] + params["b_hh"])                         # (1, 4H)

    if hidden_state is None:
        # TODO(synk): the PyTorch module also accepts a per-sample Python list
        # with None entries; only the dense (h0, c0) tuple / None is handled.
        h0 = jnp.zeros((B, H), jnp.float32)
        c0 = jnp.zeros((B, H), jnp.float32)
    else:
        h0, c0 = hidden_state

    embeddings, hT, cT = lstm_forward(
        states.astype(jnp.float32),
        w_comb.astype(jnp.bfloat16),
        b_comb.astype(jnp.float32),
        params["w_hh_t"].astype(jnp.bfloat16),
        h0.astype(jnp.float32),
        c0.astype(jnp.float32),
    )

    if T == 1:
        embeddings = jnp.squeeze(embeddings, axis=1)   # mirrors .squeeze(1)

    # mirrors .detach() on the returned hidden state
    return embeddings, (lax.stop_gradient(hT), lax.stop_gradient(cT))


# --------------------------------------------------------------------------
# Deterministic parameter construction + pure-JAX (unfused, f32) reference.
# --------------------------------------------------------------------------
def make_params(key, state_dim, state_embed_dim, embed_dim):
    ks = jax.random.split(key, 6)
    scale = 0.1
    return {
        # LinearEmbedder: nn.Linear(state_dim, state_embed_dim), stored transposed
        "w_embed_t": scale * jax.random.normal(ks[0], (state_dim, state_embed_dim), jnp.float32),
        "b_embed":   scale * jax.random.normal(ks[1], (1, state_embed_dim), jnp.float32),
        # nn.LSTMCell(state_embed_dim, embed_dim), weights stored transposed (in, 4H)
        "w_ih_t": scale * jax.random.normal(ks[2], (state_embed_dim, 4 * embed_dim), jnp.float32),
        "w_hh_t": scale * jax.random.normal(ks[3], (embed_dim, 4 * embed_dim), jnp.float32),
        "b_ih":   scale * jax.random.normal(ks[4], (1, 4 * embed_dim), jnp.float32),
        "b_hh":   scale * jax.random.normal(ks[5], (1, 4 * embed_dim), jnp.float32),
    }


def reference_forward(states, params):
    """Unfused f32 path matching the PyTorch module op-for-op."""
    B, T, D = states.shape
    H = params["w_hh_t"].shape[0]
    x = states.reshape(B * T, D) @ params["w_embed_t"] + params["b_embed"]
    x = x.reshape(B, T, -1)
    h = jnp.zeros((B, H), jnp.float32)
    c = jnp.zeros((B, H), jnp.float32)
    outs = []
    for t in range(T):
        gates = x[:, t, :] @ params["w_ih_t"] + h @ params["w_hh_t"] \
            + params["b_ih"] + params["b_hh"]
        i = jax.nn.sigmoid(gates[:, 0 * H:1 * H])
        f = jax.nn.sigmoid(gates[:, 1 * H:2 * H])
        g = jnp.tanh(gates[:, 2 * H:3 * H])
        o = jax.nn.sigmoid(gates[:, 3 * H:4 * H])
        c = f * c + i * g
        h = o * jnp.tanh(c)
        outs.append(h[:, None, :])
    return jnp.concatenate(outs, axis=1), (h, c)


if __name__ == "__main__":
    B, T, STATE_DIM = 2, 8, 16
    STATE_EMBED_DIM, EMBED_DIM = 64, 128

    key = jax.random.PRNGKey(0)
    k_params, k_states = jax.random.split(key)
    params = make_params(k_params, STATE_DIM, STATE_EMBED_DIM, EMBED_DIM)
    states = jax.random.normal(k_states, (B, T, STATE_DIM), jnp.float32)

    embeddings, (hT, cT) = recurrent_state_embedder(states, params, hidden_state=None)
    jax.block_until_ready((embeddings, hT, cT))

    ref_emb, (ref_h, ref_c) = reference_forward(states, params)
    assert embeddings.shape == (B, T, EMBED_DIM)
    assert hT.shape == (B, EMBED_DIM) and cT.shape == (B, EMBED_DIM)
    # Tolerance accounts for bf16 MXU operands (per perf review) and the
    # f32 W_comb = W_e @ W_ih fold; gate math / carries stay f32, so observed
    # error is a few 1e-3 against the f32 reference (values are O(0.1-0.5)).
    assert jnp.allclose(embeddings, ref_emb, atol=2e-2, rtol=2e-2)
    assert jnp.allclose(hT, ref_h, atol=2e-2, rtol=2e-2)
    assert jnp.allclose(cT, ref_c, atol=2e-2, rtol=2e-2)

    print("KERNEL_OK")
</pallas_src>

<mosaic_0001>
module attributes {stable_mosaic.version = 11 : i64} {
  func.func @_lstm_kernel(%arg0: i32, %arg1: i32, %arg2: memref<2x8x16xf32, #tpu.memory_space<vmem>>, %arg3: memref<16x512xbf16, #tpu.memory_space<vmem>>, %arg4: memref<1x512xf32, #tpu.memory_space<vmem>>, %arg5: memref<128x512xbf16, #tpu.memory_space<vmem>>, %arg6: memref<2x128xf32, #tpu.memory_space<vmem>>, %arg7: memref<2x128xf32, #tpu.memory_space<vmem>>, %arg8: memref<2x8x128xf32, #tpu.memory_space<vmem>>, %arg9: memref<2x128xf32, #tpu.memory_space<vmem>>, %arg10: memref<2x128xf32, #tpu.memory_space<vmem>>, %arg11: memref<2x128xf32, #tpu.memory_space<vmem>>, %arg12: memref<2x128xf32, #tpu.memory_space<vmem>>) attributes {dimension_semantics = [#tpu.dimension_semantics<parallel>, #tpu.dimension_semantics<arbitrary>], iteration_bounds = array<i64: 1, 1>, scalar_prefetch = 0 : i64, scratch_operands = 2 : i64, tpu.core_type = #tpu.core_type<tc>, window_params = [{transform_indices = @transform_0, window_bounds = array<i64: 2, 8, 16>}, {pipeline_mode = #tpu.pipeline_mode<synchronous>, transform_indices = @transform_1, window_bounds = array<i64: 16, 512>}, {pipeline_mode = #tpu.pipeline_mode<synchronous>, transform_indices = @transform_2, window_bounds = array<i64: 1, 512>}, {pipeline_mode = #tpu.pipeline_mode<synchronous>, transform_indices = @transform_3, window_bounds = array<i64: 128, 512>}, {transform_indices = @transform_4, window_bounds = array<i64: 2, 128>}, {transform_indices = @transform_5, window_bounds = array<i64: 2, 128>}, {transform_indices = @transform_6, window_bounds = array<i64: 2, 8, 128>}, {transform_indices = @transform_7, window_bounds = array<i64: 2, 128>}, {transform_indices = @transform_8, window_bounds = array<i64: 2, 128>}]} {
    %c0_i32 = arith.constant 0 : i32
    %0 = arith.cmpi eq, %arg1, %c0_i32 : i32
    %1 = arith.extui %0 : i1 to i32
    %c0_i32_0 = arith.constant 0 : i32
    %2 = arith.cmpi ne, %1, %c0_i32_0 : i32
    scf.if %2 {
      %c0_102 = arith.constant 0 : index
      %c0_103 = arith.constant 0 : index
      %321 = vector.load %arg6[%c0_102, %c0_103] : memref<2x128xf32, #tpu.memory_space<vmem>>, vector<2x128xf32>
      %c0_104 = arith.constant 0 : index
      %c0_105 = arith.constant 0 : index
      %322 = vector.load %arg11[%c0_104, %c0_105] : memref<2x128xf32, #tpu.memory_space<vmem>>, vector<2x128xf32>
      tpu.vector_store %arg11[%c0_104, %c0_105], %321 {strides = array<i32>} : memref<2x128xf32, #tpu.memory_space<vmem>>, vector<2x128xf32>,
      %c0_106 = arith.constant 0 : index
      %c0_107 = arith.constant 0 : index
      %323 = vector.load %arg7[%c0_106, %c0_107] : memref<2x128xf32, #tpu.memory_space<vmem>>, vector<2x128xf32>
      %c0_108 = arith.constant 0 : index
      %c0_109 = arith.constant 0 : index
      %324 = vector.load %arg12[%c0_108, %c0_109] : memref<2x128xf32, #tpu.memory_space<vmem>>, vector<2x128xf32>
      tpu.vector_store %arg12[%c0_108, %c0_109], %323 {strides = array<i32>} : memref<2x128xf32, #tpu.memory_space<vmem>>, vector<2x128xf32>,
    } else {
    }
    %c0 = arith.constant 0 : index
    %c0_1 = arith.constant 0 : index
    %3 = vector.load %arg11[%c0, %c0_1] : memref<2x128xf32, #tpu.memory_space<vmem>>, vector<2x128xf32>
    %c0_2 = arith.constant 0 : index
    %c0_3 = arith.constant 0 : index
    %4 = vector.load %arg12[%c0_2, %c0_3] : memref<2x128xf32, #tpu.memory_space<vmem>>, vector<2x128xf32>
    %c0_i32_4 = arith.constant 0 : i32
    %c8_i32 = arith.constant 8 : i32
    %5 = arith.muli %c0_i32_4, %c8_i32 : i32
    %6 = tpu.assume_multiple %5, 8 : i32
    %c0_5 = arith.constant 0 : index
    %7 = arith.index_cast %6 : i32 to index
    %c0_6 = arith.constant 0 : index
    %8 = vector.load %arg2[%c0_5, %7, %c0_6] : memref<2x8x16xf32, #tpu.memory_space<vmem>>, vector<2x8x16xf32>
    %9 = vector.extract_strided_slice %8 {offsets = [0, 0, 0], sizes = [2, 1, 16], strides = [1, 1, 1]} : vector<2x8x16xf32> to vector<2x1x16xf32>
    %10 = vector.shape_cast %9 : vector<2x1x16xf32> to vector<2x16xf32>
    %11 = arith.truncf %10 : vector<2x16xf32> to vector<2x16xbf16>
    %c0_7 = arith.constant 0 : index
    %c0_8 = arith.constant 0 : index
    %12 = vector.load %arg3[%c0_7, %c0_8] : memref<16x512xbf16, #tpu.memory_space<vmem>>, vector<16x512xbf16>
    %cst = arith.constant dense<0.000000e+00> : vector<2x512xf32>
    %13 = tpu.matmul %11, %12, %cst {dimension_numbers = #tpu.dot_dimension_numbers<[1], [0], [0], [1], [0, 0, 1, 1], [], []>} : vector<2x16xbf16>, vector<16x512xbf16>, vector<2x512xf32> -> vector<2x512xf32>
    %14 = arith.truncf %3 : vector<2x128xf32> to vector<2x128xbf16>
    %c0_9 = arith.constant 0 : index
    %c0_10 = arith.constant 0 : index
    %15 = vector.load %arg5[%c0_9, %c0_10] : memref<128x512xbf16, #tpu.memory_space<vmem>>, vector<128x512xbf16>
    %cst_11 = arith.constant dense<0.000000e+00> : vector<2x512xf32>
    %16 = tpu.matmul %14, %15, %cst_11 {dimension_numbers = #tpu.dot_dimension_numbers<[1], [0], [0], [1], [0, 0, 1, 1], [], []>} : vector<2x128xbf16>, vector<128x512xbf16>, vector<2x512xf32> -> vector<2x512xf32>
    %17 = arith.addf %13, %16 : vector<2x512xf32>
    %c0_12 = arith.constant 0 : index
    %c0_13 = arith.constant 0 : index
    %18 = vector.load %arg4[%c0_12, %c0_13] : memref<1x512xf32, #tpu.memory_space<vmem>>, vector<1x512xf32>
    %19 = vector.broadcast %18 : vector<1x512xf32> to vector<2x512xf32>
    %20 = arith.addf %17, %19 : vector<2x512xf32>
    %21 = vector.extract_strided_slice %20 {offsets = [0, 0], sizes = [2, 128], strides = [1, 1]} : vector<2x512xf32> to vector<2x128xf32>
    %22 = arith.negf %21 : vector<2x128xf32>
    %23 = math.exp %22 : vector<2x128xf32>
    %cst_14 = arith.constant 1.000000e+00 : f32
    %24 = vector.broadcast %cst_14 : f32 to vector<2x128xf32>
    %25 = arith.addf %24, %23 : vector<2x128xf32>
    %26 = arith.divf %24, %25 : vector<2x128xf32>
    %27 = vector.extract_strided_slice %20 {offsets = [0, 128], sizes = [2, 128], strides = [1, 1]} : vector<2x512xf32> to vector<2x128xf32>
    %28 = arith.negf %27 : vector<2x128xf32>
    %29 = math.exp %28 : vector<2x128xf32>
    %cst_15 = arith.constant 1.000000e+00 : f32
    %30 = vector.broadcast %cst_15 : f32 to vector<2x128xf32>
    %31 = arith.addf %30, %29 : vector<2x128xf32>
    %32 = arith.divf %30, %31 : vector<2x128xf32>
    %33 = vector.extract_strided_slice %20 {offsets = [0, 256], sizes = [2, 128], strides = [1, 1]} : vector<2x512xf32> to vector<2x128xf32>
    %34 = math.tanh %33 : vector<2x128xf32>
    %35 = vector.extract_strided_slice %20 {offsets = [0, 384], sizes = [2, 128], strides = [1, 1]} : vector<2x512xf32> to vector<2x128xf32>
    %36 = arith.negf %35 : vector<2x128xf32>
    %37 = math.exp %36 : vector<2x128xf32>
    %cst_16 = arith.constant 1.000000e+00 : f32
    %38 = vector.broadcast %cst_16 : f32 to vector<2x128xf32>
    %39 = arith.addf %38, %37 : vector<2x128xf32>
    %40 = arith.divf %38, %39 : vector<2x128xf32>
    %41 = arith.mulf %32, %4 : vector<2x128xf32>
    %42 = arith.mulf %26, %34 : vector<2x128xf32>
    %43 = arith.addf %41, %42 : vector<2x128xf32>
    %44 = math.tanh %43 : vector<2x128xf32>
    %45 = arith.mulf %40, %44 : vector<2x128xf32>
    %46 = vector.extract_strided_slice %8 {offsets = [0, 1, 0], sizes = [2, 1, 16], strides = [1, 1, 1]} : vector<2x8x16xf32> to vector<2x1x16xf32>
    %47 = vector.shape_cast %46 : vector<2x1x16xf32> to vector<2x16xf32>
    %48 = arith.truncf %47 : vector<2x16xf32> to vector<2x16xbf16>
    %c0_17 = arith.constant 0 : index
    %c0_18 = arith.constant 0 : index
    %49 = vector.load %arg3[%c0_17, %c0_18] : memref<16x512xbf16, #tpu.memory_space<vmem>>, vector<16x512xbf16>
    %cst_19 = arith.constant dense<0.000000e+00> : vector<2x512xf32>
    %50 = tpu.matmul %48, %49, %cst_19 {dimension_numbers = #tpu.dot_dimension_numbers<[1], [0], [0], [1], [0, 0, 1, 1], [], []>} : vector<2x16xbf16>, vector<16x512xbf16>, vector<2x512xf32> -> vector<2x512xf32>
    %51 = arith.truncf %45 : vector<2x128xf32> to vector<2x128xbf16>
    %c0_20 = arith.constant 0 : index
    %c0_21 = arith.constant 0 : index
    %52 = vector.load %arg5[%c0_20, %c0_21] : memref<128x512xbf16, #tpu.memory_space<vmem>>, vector<128x512xbf16>
    %cst_22 = arith.constant dense<0.000000e+00> : vector<2x512xf32>
    %53 = tpu.matmul %51, %52, %cst_22 {dimension_numbers = #tpu.dot_dimension_numbers<[1], [0], [0], [1], [0, 0, 1, 1], [], []>} : vector<2x128xbf16>, vector<128x512xbf16>, vector<2x512xf32> -> vector<2x512xf32>
    %54 = arith.addf %50, %53 : vector<2x512xf32>
    %c0_23 = arith.constant 0 : index
    %c0_24 = arith.constant 0 : index
    %55 = vector.load %arg4[%c0_23, %c0_24] : memref<1x512xf32, #tpu.memory_space<vmem>>, vector<1x512xf32>
    %56 = vector.broadcast %55 : vector<1x512xf32> to vector<2x512xf32>
    %57 = arith.addf %54, %56 : vector<2x512xf32>
    %58 = vector.extract_strided_slice %57 {offsets = [0, 0], sizes = [2, 128], strides = [1, 1]} : vector<2x512xf32> to vector<2x128xf32>
    %59 = arith.negf %58 : vector<2x128xf32>
    %60 = math.exp %59 : vector<2x128xf32>
    %cst_25 = arith.constant 1.000000e+00 : f32
    %61 = vector.broadcast %cst_25 : f32 to vector<2x128xf32>
    %62 = arith.addf %61, %60 : vector<2x128xf32>
    %63 = arith.divf %61, %62 : vector<2x128xf32>
    %64 = vector.extract_strided_slice %57 {offsets = [0, 128], sizes = [2, 128], strides = [1, 1]} : vector<2x512xf32> to vector<2x128xf32>
    %65 = arith.negf %64 : vector<2x128xf32>
    %66 = math.exp %65 : vector<2x128xf32>
    %cst_26 = arith.constant 1.000000e+00 : f32
    %67 = vector.broadcast %cst_26 : f32 to vector<2x128xf32>
    %68 = arith.addf %67, %66 : vector<2x128xf32>
    %69 = arith.divf %67, %68 : vector<2x128xf32>
    %70 = vector.extract_strided_slice %57 {offsets = [0, 256], sizes = [2, 128], strides = [1, 1]} : vector<2x512xf32> to vector<2x128xf32>
    %71 = math.tanh %70 : vector<2x128xf32>
    %72 = vector.extract_strided_slice %57 {offsets = [0, 384], sizes = [2, 128], strides = [1, 1]} : vector<2x512xf32> to vector<2x128xf32>
    %73 = arith.negf %72 : vector<2x128xf32>
    %74 = math.exp %73 : vector<2x128xf32>
    %cst_27 = arith.constant 1.000000e+00 : f32
    %75 = vector.broadcast %cst_27 : f32 to vector<2x128xf32>
    %76 = arith.addf %75, %74 : vector<2x128xf32>
    %77 = arith.divf %75, %76 : vector<2x128xf32>
    %78 = arith.mulf %69, %43 : vector<2x128xf32>
    %79 = arith.mulf %63, %71 : vector<2x128xf32>
    %80 = arith.addf %78, %79 : vector<2x128xf32>
    %81 = math.tanh %80 : vector<2x128xf32>
    %82 = arith.mulf %77, %81 : vector<2x128xf32>
    %83 = vector.extract_strided_slice %8 {offsets = [0, 2, 0], sizes = [2, 1, 16], strides = [1, 1, 1]} : vector<2x8x16xf32> to vector<2x1x16xf32>
    %84 = vector.shape_cast %83 : vector<2x1x16xf32> to vector<2x16xf32>
    %85 = arith.truncf %84 : vector<2x16xf32> to vector<2x16xbf16>
    %c0_28 = arith.constant 0 : index
    %c0_29 = arith.constant 0 : index
    %86 = vector.load %arg3[%c0_28, %c0_29] : memref<16x512xbf16, #tpu.memory_space<vmem>>, vector<16x512xbf16>
    %cst_30 = arith.constant dense<0.000000e+00> : vector<2x512xf32>
    %87 = tpu.matmul %85, %86, %cst_30 {dimension_numbers = #tpu.dot_dimension_numbers<[1], [0], [0], [1], [0, 0, 1, 1], [], []>} : vector<2x16xbf16>, vector<16x512xbf16>, vector<2x512xf32> -> vector<2x512xf32>
    %88 = arith.truncf %82 : vector<2x128xf32> to vector<2x128xbf16>
    %c0_31 = arith.constant 0 : index
    %c0_32 = arith.constant 0 : index
    %89 = vector.load %arg5[%c0_31, %c0_32] : memref<128x512xbf16, #tpu.memory_space<vmem>>, vector<128x512xbf16>
    %cst_33 = arith.constant dense<0.000000e+00> : vector<2x512xf32>
    %90 = tpu.matmul %88, %89, %cst_33 {dimension_numbers = #tpu.dot_dimension_numbers<[1], [0], [0], [1], [0, 0, 1, 1], [], []>} : vector<2x128xbf16>, vector<128x512xbf16>, vector<2x512xf32> -> vector<2x512xf32>
    %91 = arith.addf %87, %90 : vector<2x512xf32>
    %c0_34 = arith.constant 0 : index
    %c0_35 = arith.constant 0 : index
    %92 = vector.load %arg4[%c0_34, %c0_35] : memref<1x512xf32, #tpu.memory_space<vmem>>, vector<1x512xf32>
    %93 = vector.broadcast %92 : vector<1x512xf32> to vector<2x512xf32>
    %94 = arith.addf %91, %93 : vector<2x512xf32>
    %95 = vector.extract_strided_slice %94 {offsets = [0, 0], sizes = [2, 128], strides = [1, 1]} : vector<2x512xf32> to vector<2x128xf32>
    %96 = arith.negf %95 : vector<2x128xf32>
    %97 = math.exp %96 : vector<2x128xf32>
    %cst_36 = arith.constant 1.000000e+00 : f32
    %98 = vector.broadcast %cst_36 : f32 to vector<2x128xf32>
    %99 = arith.addf %98, %97 : vector<2x128xf32>
    %100 = arith.divf %98, %99 : vector<2x128xf32>
    %101 = vector.extract_strided_slice %94 {offsets = [0, 128], sizes = [2, 128], strides = [1, 1]} : vector<2x512xf32> to vector<2x128xf32>
    %102 = arith.negf %101 : vector<2x128xf32>
    %103 = math.exp %102 : vector<2x128xf32>
    %cst_37 = arith.constant 1.000000e+00 : f32
    %104 = vector.broadcast %cst_37 : f32 to vector<2x128xf32>
    %105 = arith.addf %104, %103 : vector<2x128xf32>
    %106 = arith.divf %104, %105 : vector<2x128xf32>
    %107 = vector.extract_strided_slice %94 {offsets = [0, 256], sizes = [2, 128], strides = [1, 1]} : vector<2x512xf32> to vector<2x128xf32>
    %108 = math.tanh %107 : vector<2x128xf32>
    %109 = vector.extract_strided_slice %94 {offsets = [0, 384], sizes = [2, 128], strides = [1, 1]} : vector<2x512xf32> to vector<2x128xf32>
    %110 = arith.negf %109 : vector<2x128xf32>
    %111 = math.exp %110 : vector<2x128xf32>
    %cst_38 = arith.constant 1.000000e+00 : f32
    %112 = vector.broadcast %cst_38 : f32 to vector<2x128xf32>
    %113 = arith.addf %112, %111 : vector<2x128xf32>
    %114 = arith.divf %112, %113 : vector<2x128xf32>
    %115 = arith.mulf %106, %80 : vector<2x128xf32>
    %116 = arith.mulf %100, %108 : vector<2x128xf32>
    %117 = arith.addf %115, %116 : vector<2x128xf32>
    %118 = math.tanh %117 : vector<2x128xf32>
    %119 = arith.mulf %114, %118 : vector<2x128xf32>
    %120 = vector.extract_strided_slice %8 {offsets = [0, 3, 0], sizes = [2, 1, 16], strides = [1, 1, 1]} : vector<2x8x16xf32> to vector<2x1x16xf32>
    %121 = vector.shape_cast %120 : vector<2x1x16xf32> to vector<2x16xf32>
    %122 = arith.truncf %121 : vector<2x16xf32> to vector<2x16xbf16>
    %c0_39 = arith.constant 0 : index
    %c0_40 = arith.constant 0 : index
    %123 = vector.load %arg3[%c0_39, %c0_40] : memref<16x512xbf16, #tpu.memory_space<vmem>>, vector<16x512xbf16>
    %cst_41 = arith.constant dense<0.000000e+00> : vector<2x512xf32>
    %124 = tpu.matmul %122, %123, %cst_41 {dimension_numbers = #tpu.dot_dimension_numbers<[1], [0], [0], [1], [0, 0, 1, 1], [], []>} : vector<2x16xbf16>, vector<16x512xbf16>, vector<2x512xf32> -> vector<2x512xf32>
    %125 = arith.truncf %119 : vector<2x128xf32> to vector<2x128xbf16>
    %c0_42 = arith.constant 0 : index
    %c0_43 = arith.constant 0 : index
    %126 = vector.load %arg5[%c0_42, %c0_43] : memref<128x512xbf16, #tpu.memory_space<vmem>>, vector<128x512xbf16>
    %cst_44 = arith.constant dense<0.000000e+00> : vector<2x512xf32>
    %127 = tpu.matmul %125, %126, %cst_44 {dimension_numbers = #tpu.dot_dimension_numbers<[1], [0], [0], [1], [0, 0, 1, 1], [], []>} : vector<2x128xbf16>, vector<128x512xbf16>, vector<2x512xf32> -> vector<2x512xf32>
    %128 = arith.addf %124, %127 : vector<2x512xf32>
    %c0_45 = arith.constant 0 : index
    %c0_46 = arith.constant 0 : index
    %129 = vector.load %arg4[%c0_45, %c0_46] : memref<1x512xf32, #tpu.memory_space<vmem>>, vector<1x512xf32>
    %130 = vector.broadcast %129 : vector<1x512xf32> to vector<2x512xf32>
    %131 = arith.addf %128, %130 : vector<2x512xf32>
    %132 = vector.extract_strided_slice %131 {offsets = [0, 0], sizes = [2, 128], strides = [1, 1]} : vector<2x512xf32> to vector<2x128xf32>
    %133 = arith.negf %132 : vector<2x128xf32>
    %134 = math.exp %133 : vector<2x128xf32>
    %cst_47 = arith.constant 1.000000e+00 : f32
    %135 = vector.broadcast %cst_47 : f32 to vector<2x128xf32>
    %136 = arith.addf %135, %134 : vector<2x128xf32>
    %137 = arith.divf %135, %136 : vector<2x128xf32>
    %138 = vector.extract_strided_slice %131 {offsets = [0, 128], sizes = [2, 128], strides = [1, 1]} : vector<2x512xf32> to vector<2x128xf32>
    %139 = arith.negf %138 : vector<2x128xf32>
    %140 = math.exp %139 : vector<2x128xf32>
    %cst_48 = arith.constant 1.000000e+00 : f32
    %141 = vector.broadcast %cst_48 : f32 to vector<2x128xf32>
    %142 = arith.addf %141, %140 : vector<2x128xf32>
    %143 = arith.divf %141, %142 : vector<2x128xf32>
    %144 = vector.extract_strided_slice %131 {offsets = [0, 256], sizes = [2, 128], strides = [1, 1]} : vector<2x512xf32> to vector<2x128xf32>
    %145 = math.tanh %144 : vector<2x128xf32>
    %146 = vector.extract_strided_slice %131 {offsets = [0, 384], sizes = [2, 128], strides = [1, 1]} : vector<2x512xf32> to vector<2x128xf32>
    %147 = arith.negf %146 : vector<2x128xf32>
    %148 = math.exp %147 : vector<2x128xf32>
    %cst_49 = arith.constant 1.000000e+00 : f32
    %149 = vector.broadcast %cst_49 : f32 to vector<2x128xf32>
    %150 = arith.addf %149, %148 : vector<2x128xf32>
    %151 = arith.divf %149, %150 : vector<2x128xf32>
    %152 = arith.mulf %143, %117 : vector<2x128xf32>
    %153 = arith.mulf %137, %145 : vector<2x128xf32>
    %154 = arith.addf %152, %153 : vector<2x128xf32>
    %155 = math.tanh %154 : vector<2x128xf32>
    %156 = arith.mulf %151, %155 : vector<2x128xf32>
    %157 = vector.extract_strided_slice %8 {offsets = [0, 4, 0], sizes = [2, 1, 16], strides = [1, 1, 1]} : vector<2x8x16xf32> to vector<2x1x16xf32>
    %158 = vector.shape_cast %157 : vector<2x1x16xf32> to vector<2x16xf32>
    %159 = arith.truncf %158 : vector<2x16xf32> to vector<2x16xbf16>
    %c0_50 = arith.constant 0 : index
    %c0_51 = arith.constant 0 : index
    %160 = vector.load %arg3[%c0_50, %c0_51] : memref<16x512xbf16, #tpu.memory_space<vmem>>, vector<16x512xbf16>
    %cst_52 = arith.constant dense<0.000000e+00> : vector<2x512xf32>
    %161 = tpu.matmul %159, %160, %cst_52 {dimension_numbers = #tpu.dot_dimension_numbers<[1], [0], [0], [1], [0, 0, 1, 1], [], []>} : vector<2x16xbf16>, vector<16x512xbf16>, vector<2x512xf32> -> vector<2x512xf32>
    %162 = arith.truncf %156 : vector<2x128xf32> to vector<2x128xbf16>
    %c0_53 = arith.constant 0 : index
    %c0_54 = arith.constant 0 : index
    %163 = vector.load %arg5[%c0_53, %c0_54] : memref<128x512xbf16, #tpu.memory_space<vmem>>, vector<128x512xbf16>
    %cst_55 = arith.constant dense<0.000000e+00> : vector<2x512xf32>
    %164 = tpu.matmul %162, %163, %cst_55 {dimension_numbers = #tpu.dot_dimension_numbers<[1], [0], [0], [1], [0, 0, 1, 1], [], []>} : vector<2x128xbf16>, vector<128x512xbf16>, vector<2x512xf32> -> vector<2x512xf32>
    %165 = arith.addf %161, %164 : vector<2x512xf32>
    %c0_56 = arith.constant 0 : index
    %c0_57 = arith.constant 0 : index
    %166 = vector.load %arg4[%c0_56, %c0_57] : memref<1x512xf32, #tpu.memory_space<vmem>>, vector<1x512xf32>
    %167 = vector.broadcast %166 : vector<1x512xf32> to vector<2x512xf32>
    %168 = arith.addf %165, %167 : vector<2x512xf32>
    %169 = vector.extract_strided_slice %168 {offsets = [0, 0], sizes = [2, 128], strides = [1, 1]} : vector<2x512xf32> to vector<2x128xf32>
    %170 = arith.negf %169 : vector<2x128xf32>
    %171 = math.exp %170 : vector<2x128xf32>
    %cst_58 = arith.constant 1.000000e+00 : f32
    %172 = vector.broadcast %cst_58 : f32 to vector<2x128xf32>
    %173 = arith.addf %172, %171 : vector<2x128xf32>
    %174 = arith.divf %172, %173 : vector<2x128xf32>
    %175 = vector.extract_strided_slice %168 {offsets = [0, 128], sizes = [2, 128], strides = [1, 1]} : vector<2x512xf32> to vector<2x128xf32>
    %176 = arith.negf %175 : vector<2x128xf32>
    %177 = math.exp %176 : vector<2x128xf32>
    %cst_59 = arith.constant 1.000000e+00 : f32
    %178 = vector.broadcast %cst_59 : f32 to vector<2x128xf32>
    %179 = arith.addf %178, %177 : vector<2x128xf32>
    %180 = arith.divf %178, %179 : vector<2x128xf32>
    %181 = vector.extract_strided_slice %168 {offsets = [0, 256], sizes = [2, 128], strides = [1, 1]} : vector<2x512xf32> to vector<2x128xf32>
    %182 = math.tanh %181 : vector<2x128xf32>
    %183 = vector.extract_strided_slice %168 {offsets = [0, 384], sizes = [2, 128], strides = [1, 1]} : vector<2x512xf32> to vector<2x128xf32>
    %184 = arith.negf %183 : vector<2x128xf32>
    %185 = math.exp %184 : vector<2x128xf32>
    %cst_60 = arith.constant 1.000000e+00 : f32
    %186 = vector.broadcast %cst_60 : f32 to vector<2x128xf32>
    %187 = arith.addf %186, %185 : vector<2x128xf32>
    %188 = arith.divf %186, %187 : vector<2x128xf32>
    %189 = arith.mulf %180, %154 : vector<2x128xf32>
    %190 = arith.mulf %174, %182 : vector<2x128xf32>
    %191 = arith.addf %189, %190 : vector<2x128xf32>
    %192 = math.tanh %191 : vector<2x128xf32>
    %193 = arith.mulf %188, %192 : vector<2x128xf32>
    %194 = vector.extract_strided_slice %8 {offsets = [0, 5, 0], sizes = [2, 1, 16], strides = [1, 1, 1]} : vector<2x8x16xf32> to vector<2x1x16xf32>
    %195 = vector.shape_cast %194 : vector<2x1x16xf32> to vector<2x16xf32>
    %196 = arith.truncf %195 : vector<2x16xf32> to vector<2x16xbf16>
    %c0_61 = arith.constant 0 : index
    %c0_62 = arith.constant 0 : index
    %197 = vector.load %arg3[%c0_61, %c0_62] : memref<16x512xbf16, #tpu.memory_space<vmem>>, vector<16x512xbf16>
    %cst_63 = arith.constant dense<0.000000e+00> : vector<2x512xf32>
    %198 = tpu.matmul %196, %197, %cst_63 {dimension_numbers = #tpu.dot_dimension_numbers<[1], [0], [0], [1], [0, 0, 1, 1], [], []>} : vector<2x16xbf16>, vector<16x512xbf16>, vector<2x512xf32> -> vector<2x512xf32>
    %199 = arith.truncf %193 : vector<2x128xf32> to vector<2x128xbf16>
    %c0_64 = arith.constant 0 : index
    %c0_65 = arith.constant 0 : index
    %200 = vector.load %arg5[%c0_64, %c0_65] : memref<128x512xbf16, #tpu.memory_space<vmem>>, vector<128x512xbf16>
    %cst_66 = arith.constant dense<0.000000e+00> : vector<2x512xf32>
    %201 = tpu.matmul %199, %200, %cst_66 {dimension_numbers = #tpu.dot_dimension_numbers<[1], [0], [0], [1], [0, 0, 1, 1], [], []>} : vector<2x128xbf16>, vector<128x512xbf16>, vector<2x512xf32> -> vector<2x512xf32>
    %202 = arith.addf %198, %201 : vector<2x512xf32>
    %c0_67 = arith.constant 0 : index
    %c0_68 = arith.constant 0 : index
    %203 = vector.load %arg4[%c0_67, %c0_68] : memref<1x512xf32, #tpu.memory_space<vmem>>, vector<1x512xf32>
    %204 = vector.broadcast %203 : vector<1x512xf32> to vector<2x512xf32>
    %205 = arith.addf %202, %204 : vector<2x512xf32>
    %206 = vector.extract_strided_slice %205 {offsets = [0, 0], sizes = [2, 128], strides = [1, 1]} : vector<2x512xf32> to vector<2x128xf32>
    %207 = arith.negf %206 : vector<2x128xf32>
    %208 = math.exp %207 : vector<2x128xf32>
    %cst_69 = arith.constant 1.000000e+00 : f32
    %209 = vector.broadcast %cst_69 : f32 to vector<2x128xf32>
    %210 = arith.addf %209, %208 : vector<2x128xf32>
    %211 = arith.divf %209, %210 : vector<2x128xf32>
    %212 = vector.extract_strided_slice %205 {offsets = [0, 128], sizes = [2, 128], strides = [1, 1]} : vector<2x512xf32> to vector<2x128xf32>
    %213 = arith.negf %212 : vector<2x128xf32>
    %214 = math.exp %213 : vector<2x128xf32>
    %cst_70 = arith.constant 1.000000e+00 : f32
    %215 = vector.broadcast %cst_70 : f32 to vector<2x128xf32>
    %216 = arith.addf %215, %214 : vector<2x128xf32>
    %217 = arith.divf %215, %216 : vector<2x128xf32>
    %218 = vector.extract_strided_slice %205 {offsets = [0, 256], sizes = [2, 128], strides = [1, 1]} : vector<2x512xf32> to vector<2x128xf32>
    %219 = math.tanh %218 : vector<2x128xf32>
    %220 = vector.extract_strided_slice %205 {offsets = [0, 384], sizes = [2, 128], strides = [1, 1]} : vector<2x512xf32> to vector<2x128xf32>
    %221 = arith.negf %220 : vector<2x128xf32>
    %222 = math.exp %221 : vector<2x128xf32>
    %cst_71 = arith.constant 1.000000e+00 : f32
    %223 = vector.broadcast %cst_71 : f32 to vector<2x128xf32>
    %224 = arith.addf %223, %222 : vector<2x128xf32>
    %225 = arith.divf %223, %224 : vector<2x128xf32>
    %226 = arith.mulf %217, %191 : vector<2x128xf32>
    %227 = arith.mulf %211, %219 : vector<2x128xf32>
    %228 = arith.addf %226, %227 : vector<2x128xf32>
    %229 = math.tanh %228 : vector<2x128xf32>
    %230 = arith.mulf %225, %229 : vector<2x128xf32>
    %231 = vector.extract_strided_slice %8 {offsets = [0, 6, 0], sizes = [2, 1, 16], strides = [1, 1, 1]} : vector<2x8x16xf32> to vector<2x1x16xf32>
    %232 = vector.shape_cast %231 : vector<2x1x16xf32> to vector<2x16xf32>
    %233 = arith.truncf %232 : vector<2x16xf32> to vector<2x16xbf16>
    %c0_72 = arith.constant 0 : index
    %c0_73 = arith.constant 0 : index
    %234 = vector.load %arg3[%c0_72, %c0_73] : memref<16x512xbf16, #tpu.memory_space<vmem>>, vector<16x512xbf16>
    %cst_74 = arith.constant dense<0.000000e+00> : vector<2x512xf32>
    %235 = tpu.matmul %233, %234, %cst_74 {dimension_numbers = #tpu.dot_dimension_numbers<[1], [0], [0], [1], [0, 0, 1, 1], [], []>} : vector<2x16xbf16>, vector<16x512xbf16>, vector<2x512xf32> -> vector<2x512xf32>
    %236 = arith.truncf %230 : vector<2x128xf32> to vector<2x128xbf16>
    %c0_75 = arith.constant 0 : index
    %c0_76 = arith.constant 0 : index
    %237 = vector.load %arg5[%c0_75, %c0_76] : memref<128x512xbf16, #tpu.memory_space<vmem>>, vector<128x512xbf16>
    %cst_77 = arith.constant dense<0.000000e+00> : vector<2x512xf32>
    %238 = tpu.matmul %236, %237, %cst_77 {dimension_numbers = #tpu.dot_dimension_numbers<[1], [0], [0], [1], [0, 0, 1, 1], [], []>} : vector<2x128xbf16>, vector<128x512xbf16>, vector<2x512xf32> -> vector<2x512xf32>
    %239 = arith.addf %235, %238 : vector<2x512xf32>
    %c0_78 = arith.constant 0 : index
    %c0_79 = arith.constant 0 : index
    %240 = vector.load %arg4[%c0_78, %c0_79] : memref<1x512xf32, #tpu.memory_space<vmem>>, vector<1x512xf32>
    %241 = vector.broadcast %240 : vector<1x512xf32> to vector<2x512xf32>
    %242 = arith.addf %239, %241 : vector<2x512xf32>
    %243 = vector.extract_strided_slice %242 {offsets = [0, 0], sizes = [2, 128], strides = [1, 1]} : vector<2x512xf32> to vector<2x128xf32>
    %244 = arith.negf %243 : vector<2x128xf32>
    %245 = math.exp %244 : vector<2x128xf32>
    %cst_80 = arith.constant 1.000000e+00 : f32
    %246 = vector.broadcast %cst_80 : f32 to vector<2x128xf32>
    %247 = arith.addf %246, %245 : vector<2x128xf32>
    %248 = arith.divf %246, %247 : vector<2x128xf32>
    %249 = vector.extract_strided_slice %242 {offsets = [0, 128], sizes = [2, 128], strides = [1, 1]} : vector<2x512xf32> to vector<2x128xf32>
    %250 = arith.negf %249 : vector<2x128xf32>
    %251 = math.exp %250 : vector<2x128xf32>
    %cst_81 = arith.constant 1.000000e+00 : f32
    %252 = vector.broadcast %cst_81 : f32 to vector<2x128xf32>
    %253 = arith.addf %252, %251 : vector<2x128xf32>
    %254 = arith.divf %252, %253 : vector<2x128xf32>
    %255 = vector.extract_strided_slice %242 {offsets = [0, 256], sizes = [2, 128], strides = [1, 1]} : vector<2x512xf32> to vector<2x128xf32>
    %256 = math.tanh %255 : vector<2x128xf32>
    %257 = vector.extract_strided_slice %242 {offsets = [0, 384], sizes = [2, 128], strides = [1, 1]} : vector<2x512xf32> to vector<2x128xf32>
    %258 = arith.negf %257 : vector<2x128xf32>
    %259 = math.exp %258 : vector<2x128xf32>
    %cst_82 = arith.constant 1.000000e+00 : f32
    %260 = vector.broadcast %cst_82 : f32 to vector<2x128xf32>
    %261 = arith.addf %260, %259 : vector<2x128xf32>
    %262 = arith.divf %260, %261 : vector<2x128xf32>
    %263 = arith.mulf %254, %228 : vector<2x128xf32>
    %264 = arith.mulf %248, %256 : vector<2x128xf32>
    %265 = arith.addf %263, %264 : vector<2x128xf32>
    %266 = math.tanh %265 : vector<2x128xf32>
    %267 = arith.mulf %262, %266 : vector<2x128xf32>
    %268 = vector.extract_strided_slice %8 {offsets = [0, 7, 0], sizes = [2, 1, 16], strides = [1, 1, 1]} : vector<2x8x16xf32> to vector<2x1x16xf32>
    %269 = vector.shape_cast %268 : vector<2x1x16xf32> to vector<2x16xf32>
    %270 = arith.truncf %269 : vector<2x16xf32> to vector<2x16xbf16>
    %c0_83 = arith.constant 0 : index
    %c0_84 = arith.constant 0 : index
    %271 = vector.load %arg3[%c0_83, %c0_84] : memref<16x512xbf16, #tpu.memory_space<vmem>>, vector<16x512xbf16>
    %cst_85 = arith.constant dense<0.000000e+00> : vector<2x512xf32>
    %272 = tpu.matmul %270, %271, %cst_85 {dimension_numbers = #tpu.dot_dimension_numbers<[1], [0], [0], [1], [0, 0, 1, 1], [], []>} : vector<2x16xbf16>, vector<16x512xbf16>, vector<2x512xf32> -> vector<2x512xf32>
    %273 = arith.truncf %267 : vector<2x128xf32> to vector<2x128xbf16>
    %c0_86 = arith.constant 0 : index
    %c0_87 = arith.constant 0 : index
    %274 = vector.load %arg5[%c0_86, %c0_87] : memref<128x512xbf16, #tpu.memory_space<vmem>>, vector<128x512xbf16>
    %cst_88 = arith.constant dense<0.000000e+00> : vector<2x512xf32>
    %275 = tpu.matmul %273, %274, %cst_88 {dimension_numbers = #tpu.dot_dimension_numbers<[1], [0], [0], [1], [0, 0, 1, 1], [], []>} : vector<2x128xbf16>, vector<128x512xbf16>, vector<2x512xf32> -> vector<2x512xf32>
    %276 = arith.addf %272, %275 : vector<2x512xf32>
    %c0_89 = arith.constant 0 : index
    %c0_90 = arith.constant 0 : index
    %277 = vector.load %arg4[%c0_89, %c0_90] : memref<1x512xf32, #tpu.memory_space<vmem>>, vector<1x512xf32>
    %278 = vector.broadcast %277 : vector<1x512xf32> to vector<2x512xf32>
    %279 = arith.addf %276, %278 : vector<2x512xf32>
    %280 = vector.extract_strided_slice %279 {offsets = [0, 0], sizes = [2, 128], strides = [1, 1]} : vector<2x512xf32> to vector<2x128xf32>
    %281 = arith.negf %280 : vector<2x128xf32>
    %282 = math.exp %281 : vector<2x128xf32>
    %cst_91 = arith.constant 1.000000e+00 : f32
    %283 = vector.broadcast %cst_91 : f32 to vector<2x128xf32>
    %284 = arith.addf %283, %282 : vector<2x128xf32>
    %285 = arith.divf %283, %284 : vector<2x128xf32>
    %286 = vector.extract_strided_slice %279 {offsets = [0, 128], sizes = [2, 128], strides = [1, 1]} : vector<2x512xf32> to vector<2x128xf32>
    %287 = arith.negf %286 : vector<2x128xf32>
    %288 = math.exp %287 : vector<2x128xf32>
    %cst_92 = arith.constant 1.000000e+00 : f32
    %289 = vector.broadcast %cst_92 : f32 to vector<2x128xf32>
    %290 = arith.addf %289, %288 : vector<2x128xf32>
    %291 = arith.divf %289, %290 : vector<2x128xf32>
    %292 = vector.extract_strided_slice %279 {offsets = [0, 256], sizes = [2, 128], strides = [1, 1]} : vector<2x512xf32> to vector<2x128xf32>
    %293 = math.tanh %292 : vector<2x128xf32>
    %294 = vector.extract_strided_slice %279 {offsets = [0, 384], sizes = [2, 128], strides = [1, 1]} : vector<2x512xf32> to vector<2x128xf32>
    %295 = arith.negf %294 : vector<2x128xf32>
    %296 = math.exp %295 : vector<2x128xf32>
    %cst_93 = arith.constant 1.000000e+00 : f32
    %297 = vector.broadcast %cst_93 : f32 to vector<2x128xf32>
    %298 = arith.addf %297, %296 : vector<2x128xf32>
    %299 = arith.divf %297, %298 : vector<2x128xf32>
    %300 = arith.mulf %291, %265 : vector<2x128xf32>
    %301 = arith.mulf %285, %293 : vector<2x128xf32>
    %302 = arith.addf %300, %301 : vector<2x128xf32>
    %303 = math.tanh %302 : vector<2x128xf32>
    %304 = arith.mulf %299, %303 : vector<2x128xf32>
    %305 = vector.shape_cast %45 : vector<2x128xf32> to vector<2x1x128xf32>
    %306 = vector.shape_cast %82 : vector<2x128xf32> to vector<2x1x128xf32>
    %307 = vector.shape_cast %119 : vector<2x128xf32> to vector<2x1x128xf32>
    %308 = vector.shape_cast %156 : vector<2x128xf32> to vector<2x1x128xf32>
    %309 = vector.shape_cast %193 : vector<2x128xf32> to vector<2x1x128xf32>
    %310 = vector.shape_cast %230 : vector<2x128xf32> to vector<2x1x128xf32>
    %311 = vector.shape_cast %267 : vector<2x128xf32> to vector<2x1x128xf32>
    %312 = vector.shape_cast %304 : vector<2x128xf32> to vector<2x1x128xf32>
    %313 = tpu.concatenate %305, %306, %307, %308, %309, %310, %311, %312 in 1 : vector<2x1x128xf32>, vector<2x1x128xf32>, vector<2x1x128xf32>, vector<2x1x128xf32>, vector<2x1x128xf32>, vector<2x1x128xf32>, vector<2x1x128xf32>, vector<2x1x128xf32> -> vector<2x8x128xf32>
    %c0_94 = arith.constant 0 : index
    %314 = arith.index_cast %6 : i32 to index
    %c0_95 = arith.constant 0 : index
    %315 = vector.load %arg8[%c0_94, %314, %c0_95] : memref<2x8x128xf32, #tpu.memory_space<vmem>>, vector<2x8x128xf32>
    tpu.vector_store %arg8[%c0_94, %314, %c0_95], %313 {strides = array<i32>} : memref<2x8x128xf32, #tpu.memory_space<vmem>>, vector<2x8x128xf32>,
    %c1_i32 = arith.constant 1 : i32
    %c0_96 = arith.constant 0 : index
    %c0_97 = arith.constant 0 : index
    %316 = vector.load %arg11[%c0_96, %c0_97] : memref<2x128xf32, #tpu.memory_space<vmem>>, vector<2x128xf32>
    tpu.vector_store %arg11[%c0_96, %c0_97], %304 {strides = array<i32>} : memref<2x128xf32, #tpu.memory_space<vmem>>, vector<2x128xf32>,
    %c0_98 = arith.constant 0 : index
    %c0_99 = arith.constant 0 : index
    %317 = vector.load %arg12[%c0_98, %c0_99] : memref<2x128xf32, #tpu.memory_space<vmem>>, vector<2x128xf32>
    tpu.vector_store %arg12[%c0_98, %c0_99], %302 {strides = array<i32>} : memref<2x128xf32, #tpu.memory_space<vmem>>, vector<2x128xf32>,
    %c0_i32_100 = arith.constant 0 : i32
    %318 = arith.cmpi eq, %arg1, %c0_i32_100 : i32
    %319 = arith.extui %318 : i1 to i32
    %c0_i32_101 = arith.constant 0 : i32
    %320 = arith.cmpi ne, %319, %c0_i32_101 : i32
    scf.if %320 {
      %c0_102 = arith.constant 0 : index
      %c0_103 = arith.constant 0 : index
      %321 = vector.load %arg9[%c0_102, %c0_103] : memref<2x128xf32, #tpu.memory_space<vmem>>, vector<2x128xf32>
      tpu.vector_store %arg9[%c0_102, %c0_103], %304 {strides = array<i32>} : memref<2x128xf32, #tpu.memory_space<vmem>>, vector<2x128xf32>,
      %c0_104 = arith.constant 0 : index
      %c0_105 = arith.constant 0 : index
      %322 = vector.load %arg10[%c0_104, %c0_105] : memref<2x128xf32, #tpu.memory_space<vmem>>, vector<2x128xf32>
      tpu.vector_store %arg10[%c0_104, %c0_105], %302 {strides = array<i32>} : memref<2x128xf32, #tpu.memory_space<vmem>>, vector<2x128xf32>,
    } else {
    }
    return
  }
  func.func @transform_0(%arg0: i32, %arg1: i32) -> (i32, i32, i32) {
    %c0_i32 = arith.constant 0 : i32
    %c0_i32_0 = arith.constant 0 : i32
    return %arg0, %arg1, %c0_i32 : i32, i32, i32
  }
  func.func @transform_1(%arg0: i32, %arg1: i32) -> (i32, i32) {
    %c0_i32 = arith.constant 0 : i32
    %c0_i32_0 = arith.constant 0 : i32
    %c0_i32_1 = arith.constant 0 : i32
    return %c0_i32, %c0_i32_0 : i32, i32
  }
  func.func @transform_2(%arg0: i32, %arg1: i32) -> (i32, i32) {
    %c0_i32 = arith.constant 0 : i32
    %c0_i32_0 = arith.constant 0 : i32
    %c0_i32_1 = arith.constant 0 : i32
    return %c0_i32, %c0_i32_0 : i32, i32
  }
  func.func @transform_3(%arg0: i32, %arg1: i32) -> (i32, i32) {
    %c0_i32 = arith.constant 0 : i32
    %c0_i32_0 = arith.constant 0 : i32
    %c0_i32_1 = arith.constant 0 : i32
    return %c0_i32, %c0_i32_0 : i32, i32
  }
  func.func @transform_4(%arg0: i32, %arg1: i32) -> (i32, i32) {
    %c0_i32 = arith.constant 0 : i32
    %c0_i32_0 = arith.constant 0 : i32
    return %arg0, %c0_i32 : i32, i32
  }
  func.func @transform_5(%arg0: i32, %arg1: i32) -> (i32, i32) {
    %c0_i32 = arith.constant 0 : i32
    %c0_i32_0 = arith.constant 0 : i32
    return %arg0, %c0_i32 : i32, i32
  }
  func.func @transform_6(%arg0: i32, %arg1: i32) -> (i32, i32, i32) {
    %c0_i32 = arith.constant 0 : i32
    %c0_i32_0 = arith.constant 0 : i32
    return %arg0, %arg1, %c0_i32 : i32, i32, i32
  }
  func.func @transform_7(%arg0: i32, %arg1: i32) -> (i32, i32) {
    %c0_i32 = arith.constant 0 : i32
    %c0_i32_0 = arith.constant 0 : i32
    return %arg0, %c0_i32 : i32, i32
  }
  func.func @transform_8(%arg0: i32, %arg1: i32) -> (i32, i32) {
    %c0_i32 = arith.constant 0 : i32
    %c0_i32_0 = arith.constant 0 : i32
    return %arg0, %c0_i32 : i32, i32
  }
}

</mosaic_0001>

<llo_original>
// kernel: tpu_custom_call.1
$region0: #{tpu_custom_call.1}
  #allocation0 [shape = 'u32[]', space=smem, size = 0x4, offset = 0x4, fixed_abs, tag = 'smem constant byte address 0x4 - core index']
  #allocation1 [shape = 'u32[144,128]{1,0:T(1,128)}', space=vmem, size = 0x12000, scoped, tag = 'internal scratch']
  #allocation2 [shape = 'f32[2,128]{1,0:T(2,128)}', space=vmem, size = 0x400, scoped, tag = 'scratch operand']
  #allocation3 [shape = 'f32[2,128]{1,0:T(2,128)}', space=vmem, size = 0x400, scoped, tag = 'scratch operand']
  %s0 = inlined_call_operand.hbm [shape: f32[2,8,16], index: 0, kind: input, shape index: {}]
  %s1 = inlined_call_operand.hbm [shape: bf16[16,512], index: 1, kind: input, shape index: {}]
  %s2 = inlined_call_operand.vmem [shape: f32[1,512], index: 2, kind: input, shape index: {}]
  %s3 = inlined_call_operand.hbm [shape: bf16[128,512], index: 3, kind: input, shape index: {}]
  %s4 = inlined_call_operand.vmem [shape: f32[2,128], index: 4, kind: input, shape index: {}]
  %s5 = inlined_call_operand.vmem [shape: f32[2,128], index: 5, kind: input, shape index: {}]
  %s6 = inlined_call_operand.hbm [shape: f32[2,8,128], index: 6, kind: output, shape index: {0}]
  %s7 = inlined_call_operand.hbm [shape: f32[2,128], index: 7, kind: output, shape index: {1}]
  %s8 = inlined_call_operand.hbm [shape: f32[2,128], index: 8, kind: output, shape index: {2}]
  %9 = xla_tuple %s6, %s7, %s8
  %s10 = sld [smem:[#allocation0]]
  $region70: #{tpu_custom_call.1} parent=0
    _
  %s12 = ssub.s32 1, %s10
  %s13 = scalar_select 0, %s12, %s10
  $region1: #{tpu_custom_call.1} parent=0
    #allocation4 [shape = 'u8[8192]{0}', space=vmem, size = 0x2000, scoped, tag = 'input window, operand 0, single buffered']
    #allocation5 [shape = 's32[1]{0}', space=sflag, size = 0x4, scoped, tag = 'scoped memory for tpu_custom_call.1']
    #allocation6 [shape = 's32[1]{0}', space=sflag, size = 0x4, scoped, tag = 'scoped memory for tpu_custom_call.1']
    #allocation7 [shape = 'u8[16384]{0}', space=vmem, size = 0x4000, scoped, tag = 'input window, operand 1, single buffered']
    #allocation8 [shape = 's32[1]{0}', space=sflag, size = 0x4, scoped, tag = 'scoped memory for tpu_custom_call.1']
    #allocation9 [shape = 'u8[131072]{0}', space=vmem, size = 0x20000, scoped, tag = 'input window, operand 3, single buffered']
    #allocation10 [shape = 'u8[8192]{0}', space=vmem, size = 0x2000, scoped, tag = 'output window, operand 0, single buffered']
    #allocation11 [shape = 'u8[1024]{0}', space=vmem, size = 0x400, scoped, tag = 'output window, operand 1, single buffered']
    #allocation12 [shape = 's32[1]{0}', space=sflag, size = 0x4, scoped, tag = 'scoped memory for tpu_custom_call.1']
    #allocation13 [shape = 'u8[1024]{0}', space=vmem, size = 0x400, scoped, tag = 'output window, operand 2, single buffered']
    %14 = vsyncpa [#allocation5], 0
    %15 = vsyncpa [#allocation8], 0
    %16 = vsyncpa [#allocation6], 0
    %17 = vsyncpa [#allocation12], 0
    // Predicated region
    $region2: #{tpu_custom_call.1} parent=1 // pred_check
      _
    $region3: #{tpu_custom_call.1} parent=1 // pred_check_branch
      %19 = sbr.rel (0) target = $region5
    $region4: #{tpu_custom_call.1} parent=1 // pred_region
      %s21 = ssub.s32 256, 256
      %22 = vsyncadd [#allocation5], %s21
      %s23 = sshll.u32 [#allocation4], 4
      %s24 = int_to_ptr.vmem [resolvable:$true] %s23
      %29 = dma.hbm_to_vmem [thread:$0]  %s0, 256, %s24, [#allocation5], 128, 128, 8
    $region5: #{tpu_custom_call.1} parent=1 // pred_fallthru
      _
    // Predicated region
    $region6: #{tpu_custom_call.1} parent=1 // pred_check
      _
    $region7: #{tpu_custom_call.1} parent=1 // pred_check_branch
      %31 = sbr.rel (0) target = $region9
    $region8: #{tpu_custom_call.1} parent=1 // pred_region
      %s33 = ssub.s32 512, 512
      %34 = vsyncadd [#allocation8], %s33
      %s35 = sshll.u32 [#allocation7], 4
      %s36 = int_to_ptr.vmem [resolvable:$true] %s35
      %41 = dma.hbm_to_vmem [thread:$0]  %s1, 512, %s36, [#allocation8], 256, 256, 16
    $region9: #{tpu_custom_call.1} parent=1 // pred_fallthru
      _
    // Predicated region
    $region10: #{tpu_custom_call.1} parent=1 // pred_check
      _
    $region11: #{tpu_custom_call.1} parent=1 // pred_check_branch
      %43 = sbr.rel (0) target = $region13
    $region12: #{tpu_custom_call.1} parent=1 // pred_region
      _
    $region13: #{tpu_custom_call.1} parent=1 // pred_fallthru
      _
    // Predicated region
    $region14: #{tpu_custom_call.1} parent=1 // pred_check
      _
    $region15: #{tpu_custom_call.1} parent=1 // pred_check_branch
      %45 = sbr.rel (0) target = $region17
    $region16: #{tpu_custom_call.1} parent=1 // pred_region
      %s47 = ssub.s32 4096, 4096
      %48 = vsyncadd [#allocation8], %s47
      %s49 = sshll.u32 [#allocation9], 4
      %s50 = int_to_ptr.vmem [resolvable:$true] %s49
      %55 = dma.hbm_to_vmem [thread:$0]  %s3, 4096, %s50, [#allocation8], 256, 256, 16
    $region17: #{tpu_custom_call.1} parent=1 // pred_fallthru
      _
    // Predicated region
    $region18: #{tpu_custom_call.1} parent=1 // pred_check
      _
    $region19: #{tpu_custom_call.1} parent=1 // pred_check_branch
      %57 = sbr.rel (0) target = $region21
    $region20: #{tpu_custom_call.1} parent=1 // pred_region
      _
    $region21: #{tpu_custom_call.1} parent=1 // pred_fallthru
      _
    // Predicated region
    $region22: #{tpu_custom_call.1} parent=1 // pred_check
      _
    $region23: #{tpu_custom_call.1} parent=1 // pred_check_branch
      %59 = sbr.rel (0) target = $region25
    $region24: #{tpu_custom_call.1} parent=1 // pred_region
      _
    $region25: #{tpu_custom_call.1} parent=1 // pred_fallthru
      _
    // Predicated region
    $region26: #{tpu_custom_call.1} parent=1 // pred_check
      _
    $region27: #{tpu_custom_call.1} parent=1 // pred_check_branch
      %61 = sbr.rel (0) target = $region29
    $region28: #{tpu_custom_call.1} parent=1 // pred_region
      %62 = dma.done [#allocation5], 256
    $region29: #{tpu_custom_call.1} parent=1 // pred_fallthru
      _
    // Predicated region
    $region30: #{tpu_custom_call.1} parent=1 // pred_check
      _
    $region31: #{tpu_custom_call.1} parent=1 // pred_check_branch
      %64 = sbr.rel (0) target = $region33
    $region32: #{tpu_custom_call.1} parent=1 // pred_region
      %65 = dma.done [#allocation8], 512
    $region33: #{tpu_custom_call.1} parent=1 // pred_fallthru
      _
    // Predicated region
    $region34: #{tpu_custom_call.1} parent=1 // pred_check
      _
    $region35: #{tpu_custom_call.1} parent=1 // pred_check_branch
      %67 = sbr.rel (0) target = $region37
    $region36: #{tpu_custom_call.1} parent=1 // pred_region
      %68 = dma.done [#allocation8], 4096
    $region37: #{tpu_custom_call.1} parent=1 // pred_fallthru
      _
    %p70 = scmp.eq.s32.totalorder 0, 0
    // Predicated region
    $region38: #{tpu_custom_call.1} parent=1 // pred_check
      %p71 = pneg %p70
    $region39: #{tpu_custom_call.1} parent=1 // pred_check_branch
      %73 = sbr.rel (%p71) target = $region41
    $region40: #{tpu_custom_call.1} parent=1 // pred_region
      %v74 = vld [vmem:[%s4] sm:$0x3]
      %75 = vst [vmem:[#allocation2] sm:$0x3] %v74
      %v76 = vld [vmem:[%s5] sm:$0x3]
      %77 = vst [vmem:[#allocation3] sm:$0x3] %v76
    $region41: #{tpu_custom_call.1} parent=1 // pred_fallthru
      _
    %v78 = vld [vmem:[#allocation2] sm:$0x3]
    %v79 = vld [vmem:[#allocation3] sm:$0x3]
    %v80 = vld [vmem:[#allocation4] sm:$0xff]
    %v81 = vld [vmem:[#allocation4 + $0x8] sm:$0xff]
    %v82 = vpack.c.bf16 %v80, %v80
    %v83 = vpack.c.bf16 %v81, %v81
    %v84 = vld [vmem:[#allocation7] sm:$0xff]
    %v85 = vld [vmem:[#allocation7 + $0x8] sm:$0xff]
    %v86 = vld [vmem:[#allocation7 + $0x10] sm:$0xff]
    %v87 = vld [vmem:[#allocation7 + $0x18] sm:$0xff]
    %v88 = vpack.c.bf16 %v78, %v78
    %v89 = vld [vmem:[#allocation9] sm:$0xff]
    %v90 = vld [vmem:[#allocation9 + $0x8] sm:$0xff]
    %v91 = vld [vmem:[#allocation9 + $0x10] sm:$0xff]
    %v92 = vld [vmem:[#allocation9 + $0x18] sm:$0xff]
    %v93 = vld [vmem:[#allocation9 + $0x20] sm:$0xff]
    %v94 = vld [vmem:[#allocation9 + $0x28] sm:$0xff]
    %v95 = vld [vmem:[#allocation9 + $0x30] sm:$0xff]
    %v96 = vld [vmem:[#allocation9 + $0x38] sm:$0xff]
    %v97 = vld [vmem:[#allocation9 + $0x40] sm:$0xff]
    %v98 = vld [vmem:[#allocation9 + $0x48] sm:$0xff]
    %v99 = vld [vmem:[#allocation9 + $0x50] sm:$0xff]
    %v100 = vld [vmem:[#allocation9 + $0x58] sm:$0xff]
    %v101 = vld [vmem:[#allocation9 + $0x60] sm:$0xff]
    %v102 = vld [vmem:[#allocation9 + $0x68] sm:$0xff]
    %v103 = vld [vmem:[#allocation9 + $0x70] sm:$0xff]
    %v104 = vld [vmem:[#allocation9 + $0x78] sm:$0xff]
    %v105 = vld [vmem:[#allocation9 + $0x80] sm:$0xff]
    %v106 = vld [vmem:[#allocation9 + $0x88] sm:$0xff]
    %v107 = vld [vmem:[#allocation9 + $0x90] sm:$0xff]
    %v108 = vld [vmem:[#allocation9 + $0x98] sm:$0xff]
    %v109 = vld [vmem:[#allocation9 + $0xa0] sm:$0xff]
    %v110 = vld [vmem:[#allocation9 + $0xa8] sm:$0xff]
    %v111 = vld [vmem:[#allocation9 + $0xb0] sm:$0xff]
    %v112 = vld [vmem:[#allocation9 + $0xb8] sm:$0xff]
    %v113 = vld [vmem:[#allocation9 + $0xc0] sm:$0xff]
    %v114 = vld [vmem:[#allocation9 + $0xc8] sm:$0xff]
    %v115 = vld [vmem:[#allocation9 + $0xd0] sm:$0xff]
    %v116 = vld [vmem:[#allocation9 + $0xd8] sm:$0xff]
    %v117 = vld [vmem:[#allocation9 + $0xe0] sm:$0xff]
    %v118 = vld [vmem:[#allocation9 + $0xe8] sm:$0xff]
    %v119 = vld [vmem:[#allocation9 + $0xf0] sm:$0xff]
    %v120 = vld [vmem:[#allocation9 + $0xf8] sm:$0xff]
    %v153 = vunpack.c.l.b16 %v89
    %v154 = vunpack.c.h.b16 %v89
    %v155 = vunpack.c.l.b16 %v90
    %v156 = vunpack.c.h.b16 %v90
    %v157 = vunpack.c.l.b16 %v91
    %v158 = vunpack.c.h.b16 %v91
    %v159 = vunpack.c.l.b16 %v92
    %v160 = vunpack.c.h.b16 %v92
    %v161 = vunpack.c.l.b16 %v93
    %v162 = vunpack.c.h.b16 %v93
    %v163 = vunpack.c.l.b16 %v94
    %v164 = vunpack.c.h.b16 %v94
    %v165 = vunpack.c.l.b16 %v95
    %v166 = vunpack.c.h.b16 %v95
    %v167 = vunpack.c.l.b16 %v96
    %v168 = vunpack.c.h.b16 %v96
    %v169 = vunpack.c.l.b16 %v97
    %v170 = vunpack.c.h.b16 %v97
    %v171 = vunpack.c.l.b16 %v98
    %v172 = vunpack.c.h.b16 %v98
    %v173 = vunpack.c.l.b16 %v99
    %v174 = vunpack.c.h.b16 %v99
    %v175 = vunpack.c.l.b16 %v100
    %v176 = vunpack.c.h.b16 %v100
    %v177 = vunpack.c.l.b16 %v101
    %v178 = vunpack.c.h.b16 %v101
    %v179 = vunpack.c.l.b16 %v102
    %v180 = vunpack.c.h.b16 %v102
    %v181 = vunpack.c.l.b16 %v103
    %v182 = vunpack.c.h.b16 %v103
    %v183 = vunpack.c.l.b16 %v104
    %v184 = vunpack.c.h.b16 %v104
    %v185 = vunpack.c.l.b16 %v105
    %v186 = vunpack.c.h.b16 %v105
    %v187 = vunpack.c.l.b16 %v106
    %v188 = vunpack.c.h.b16 %v106
    %v189 = vunpack.c.l.b16 %v107
    %v190 = vunpack.c.h.b16 %v107
    %v191 = vunpack.c.l.b16 %v108
    %v192 = vunpack.c.h.b16 %v108
    %v193 = vunpack.c.l.b16 %v109
    %v194 = vunpack.c.h.b16 %v109
    %v195 = vunpack.c.l.b16 %v110
    %v196 = vunpack.c.h.b16 %v110
    %v197 = vunpack.c.l.b16 %v111
    %v198 = vunpack.c.h.b16 %v111
    %v199 = vunpack.c.l.b16 %v112
    %v200 = vunpack.c.h.b16 %v112
    %v201 = vunpack.c.l.b16 %v113
    %v202 = vunpack.c.h.b16 %v113
    %v203 = vunpack.c.l.b16 %v114
    %v204 = vunpack.c.h.b16 %v114
    %v205 = vunpack.c.l.b16 %v115
    %v206 = vunpack.c.h.b16 %v115
    %v207 = vunpack.c.l.b16 %v116
    %v208 = vunpack.c.h.b16 %v116
    %v209 = vunpack.c.l.b16 %v117
    %v210 = vunpack.c.h.b16 %v117
    %v211 = vunpack.c.l.b16 %v118
    %v212 = vunpack.c.h.b16 %v118
    %v213 = vunpack.c.l.b16 %v119
    %v214 = vunpack.c.h.b16 %v119
    %v215 = vunpack.c.l.b16 %v120
    %v216 = vunpack.c.h.b16 %v120
    %v217 = vpack.c.b16 %v157, %v153
    %v218 = vpack.c.b16 %v158, %v154
    %v219 = vpack.c.b16 %v159, %v155
    %v220 = vpack.c.b16 %v160, %v156
    %v221 = vpack.c.b16 %v165, %v161
    %v222 = vpack.c.b16 %v166, %v162
    %v223 = vpack.c.b16 %v167, %v163
    %v224 = vpack.c.b16 %v168, %v164
    %v225 = vpack.c.b16 %v173, %v169
    %v226 = vpack.c.b16 %v174, %v170
    %v227 = vpack.c.b16 %v175, %v171
    %v228 = vpack.c.b16 %v176, %v172
    %v229 = vpack.c.b16 %v181, %v177
    %v230 = vpack.c.b16 %v182, %v178
    %v231 = vpack.c.b16 %v183, %v179
    %v232 = vpack.c.b16 %v184, %v180
    %v233 = vpack.c.b16 %v189, %v185
    %v234 = vpack.c.b16 %v190, %v186
    %v235 = vpack.c.b16 %v191, %v187
    %v236 = vpack.c.b16 %v192, %v188
    %v237 = vpack.c.b16 %v197, %v193
    %v238 = vpack.c.b16 %v198, %v194
    %v239 = vpack.c.b16 %v199, %v195
    %v240 = vpack.c.b16 %v200, %v196
    %v241 = vpack.c.b16 %v205, %v201
    %v242 = vpack.c.b16 %v206, %v202
    %v243 = vpack.c.b16 %v207, %v203
    %v244 = vpack.c.b16 %v208, %v204
    %v245 = vpack.c.b16 %v213, %v209
    %v246 = vpack.c.b16 %v214, %v210
    %v247 = vpack.c.b16 %v215, %v211
    %v248 = vpack.c.b16 %v216, %v212
    %281 = vmatprep.subr.bf16.mxu0 %v218
    %282 = vmatpush1.bf16.msra.mxu0 %v217
    %283 = vmatprep.subr.bf16.mxu0 %v222
    %284 = vmatpush1.bf16.msra.mxu0 %v221
    %285 = vmatprep.subr.bf16.mxu0 %v226
    %286 = vmatpush1.bf16.msra.mxu0 %v225
    %287 = vmatprep.subr.bf16.mxu0 %v230
    %288 = vmatpush1.bf16.msra.mxu0 %v229
    %289 = vmatprep.subr.bf16.mxu0 %v234
    %290 = vmatpush1.bf16.msra.mxu0 %v233
    %291 = vmatprep.subr.bf16.mxu0 %v238
    %292 = vmatpush1.bf16.msra.mxu0 %v237
    %293 = vmatprep.subr.bf16.mxu0 %v242
    %294 = vmatpush1.bf16.msra.mxu0 %v241
    %295 = vmatprep.subr.bf16.mxu0 %v246
    %296 = vmatpush1.bf16.msra.mxu0 %v245
    %297 = vmatprep.subr.bf16.mxu0 0
    %298 = vmatpush1.bf16.msra.mxu0 0
    %299 = vmatprep.subr.bf16.mxu0 0
    %300 = vmatpush1.bf16.msra.mxu0 0
    %301 = vmatprep.subr.bf16.mxu0 0
    %302 = vmatpush1.bf16.msra.mxu0 0
    %303 = vmatprep.subr.bf16.mxu0 0
    %304 = vmatpush1.bf16.msra.mxu0 0
    %305 = vmatprep.subr.bf16.mxu0 0
    %306 = vmatpush1.bf16.msra.mxu0 0
    %307 = vmatprep.subr.bf16.mxu0 0
    %308 = vmatpush1.bf16.msra.mxu0 0
    %309 = vmatprep.subr.bf16.mxu0 0
    %310 = vmatpush1.bf16.msra.mxu0 0
    %311 = vmatprep.subr.bf16.mxu0 0
    %312 = vmatpush1.bf16.msra.mxu0 0
    %313 = vmatprep.mubr.bf16.mxu0 0
    %314 = vmatmul.mubr.bf16.gmra.mrb[0].mxu0 %v88
    %v315 = vpop.f32.mrb[0].mxu0
    %v316 = vadd.f32 0.0, %v315
    %v317 = vpop.f32.mrb[0].mxu0
    %v318 = vadd.f32 0.0, %v317
    %v319 = vpop.f32.mrb[0].mxu0
    %v320 = vpop.f32.mrb[0].mxu0
    %321 = vdwg.mxu0
    %322 = vmatprep.subr.bf16.mxu0 %v220
    %323 = vmatpush1.bf16.msra.mxu0 %v219
    %324 = vmatprep.subr.bf16.mxu0 %v224
    %325 = vmatpush1.bf16.msra.mxu0 %v223
    %326 = vmatprep.subr.bf16.mxu0 %v228
    %327 = vmatpush1.bf16.msra.mxu0 %v227
    %328 = vmatprep.subr.bf16.mxu0 %v232
    %329 = vmatpush1.bf16.msra.mxu0 %v231
    %330 = vmatprep.subr.bf16.mxu0 %v236
    %331 = vmatpush1.bf16.msra.mxu0 %v235
    %332 = vmatprep.subr.bf16.mxu0 %v240
    %333 = vmatpush1.bf16.msra.mxu0 %v239
    %334 = vmatprep.subr.bf16.mxu0 %v244
    %335 = vmatpush1.bf16.msra.mxu0 %v243
    %336 = vmatprep.subr.bf16.mxu0 %v248
    %337 = vmatpush1.bf16.msra.mxu0 %v247
    %338 = vmatprep.subr.bf16.mxu0 0
    %339 = vmatpush1.bf16.msra.mxu0 0
    %340 = vmatprep.subr.bf16.mxu0 0
    %341 = vmatpush1.bf16.msra.mxu0 0
    %342 = vmatprep.subr.bf16.mxu0 0
    %343 = vmatpush1.bf16.msra.mxu0 0
    %344 = vmatprep.subr.bf16.mxu0 0
    %345 = vmatpush1.bf16.msra.mxu0 0
    %346 = vmatprep.subr.bf16.mxu0 0
    %347 = vmatpush1.bf16.msra.mxu0 0
    %348 = vmatprep.subr.bf16.mxu0 0
    %349 = vmatpush1.bf16.msra.mxu0 0
    %350 = vmatprep.subr.bf16.mxu0 0
    %351 = vmatpush1.bf16.msra.mxu0 0
    %352 = vmatprep.subr.bf16.mxu0 0
    %353 = vmatpush1.bf16.msra.mxu0 0
    %354 = vmatprep.mubr.bf16.mxu0 0
    %355 = vmatmul.mubr.bf16.gmra.mrb[0].mxu0 %v88
    %v356 = vpop.f32.mrb[0].mxu0
    %v357 = vadd.f32 0.0, %v356
    %v358 = vpop.f32.mrb[0].mxu0
    %v359 = vadd.f32 0.0, %v358
    %v360 = vpop.f32.mrb[0].mxu0
    %v361 = vpop.f32.mrb[0].mxu0
    %362 = vdwg.mxu0
    %v365 = vunpack.c.l.b16 %v82
    %v366 = vunpack.c.l.b16 %v83
    %v367 = vrot.slane %v366, 7
    %vm368 = vcmask 1041409
    %v369 = vsel %vm368, %v367, %v365
    %v370 = vpack.c.b16 %v369, %v369
    %v375 = vunpack.c.l.b16 %v84
    %v376 = vunpack.c.h.b16 %v84
    %v377 = vunpack.c.l.b16 %v85
    %v378 = vunpack.c.h.b16 %v85
    %v379 = vunpack.c.l.b16 %v86
    %v380 = vunpack.c.h.b16 %v86
    %v381 = vunpack.c.l.b16 %v87
    %v382 = vunpack.c.h.b16 %v87
    %v383 = vpack.c.b16 %v379, %v375
    %v384 = vpack.c.b16 %v380, %v376
    %v385 = vpack.c.b16 %v381, %v377
    %v386 = vpack.c.b16 %v382, %v378
    %vm391 = vcmask 130048
    %v393 = vsel %vm391, %v370, 0
    %395 = vmatprep.subr.bf16.mxu0 %v384
    %396 = vmatpush1.bf16.msra.mxu0 %v383
    %397 = vmatprep.subr.bf16.mxu0 0
    %398 = vmatpush1.bf16.msra.mxu0 0
    %399 = vmatprep.subr.bf16.mxu0 0
    %400 = vmatpush1.bf16.msra.mxu0 0
    %401 = vmatprep.subr.bf16.mxu0 0
    %402 = vmatpush1.bf16.msra.mxu0 0
    %403 = vmatprep.subr.bf16.mxu0 0
    %404 = vmatpush1.bf16.msra.mxu0 0
    %405 = vmatprep.subr.bf16.mxu0 0
    %406 = vmatpush1.bf16.msra.mxu0 0
    %407 = vmatprep.subr.bf16.mxu0 0
    %408 = vmatpush1.bf16.msra.mxu0 0
    %409 = vmatprep.subr.bf16.mxu0 0
    %410 = vmatpush1.bf16.msra.mxu0 0
    %411 = vmatprep.subr.bf16.mxu0 0
    %412 = vmatpush1.bf16.msra.mxu0 0
    %413 = vmatprep.subr.bf16.mxu0 0
    %414 = vmatpush1.bf16.msra.mxu0 0
    %415 = vmatprep.subr.bf16.mxu0 0
    %416 = vmatpush1.bf16.msra.mxu0 0
    %417 = vmatprep.subr.bf16.mxu0 0
    %418 = vmatpush1.bf16.msra.mxu0 0
    %419 = vmatprep.subr.bf16.mxu0 0
    %420 = vmatpush1.bf16.msra.mxu0 0
    %421 = vmatprep.subr.bf16.mxu0 0
    %422 = vmatpush1.bf16.msra.mxu0 0
    %423 = vmatprep.subr.bf16.mxu0 0
    %424 = vmatpush1.bf16.msra.mxu0 0
    %425 = vmatprep.subr.bf16.mxu0 0
    %426 = vmatpush1.bf16.msra.mxu0 0
    %427 = vmatprep.mubr.bf16.mxu0 0
    %428 = vmatmul.mubr.bf16.gmra.mrb[0].mxu0 %v393
    %v429 = vpop.f32.mrb[0].mxu0
    %v430 = vadd.f32 %v316, %v429
    %v431 = vpop.f32.mrb[0].mxu0
    %v432 = vadd.f32 %v318, %v431
    %v433 = vpop.f32.mrb[0].mxu0
    %v434 = vpop.f32.mrb[0].mxu0
    %435 = vdwg.mxu0
    %436 = vmatprep.subr.bf16.mxu0 %v386
    %437 = vmatpush1.bf16.msra.mxu0 %v385
    %438 = vmatprep.subr.bf16.mxu0 0
    %439 = vmatpush1.bf16.msra.mxu0 0
    %440 = vmatprep.subr.bf16.mxu0 0
    %441 = vmatpush1.bf16.msra.mxu0 0
    %442 = vmatprep.subr.bf16.mxu0 0
    %443 = vmatpush1.bf16.msra.mxu0 0
    %444 = vmatprep.subr.bf16.mxu0 0
    %445 = vmatpush1.bf16.msra.mxu0 0
    %446 = vmatprep.subr.bf16.mxu0 0
    %447 = vmatpush1.bf16.msra.mxu0 0
    %448 = vmatprep.subr.bf16.mxu0 0
    %449 = vmatpush1.bf16.msra.mxu0 0
    %450 = vmatprep.subr.bf16.mxu0 0
    %451 = vmatpush1.bf16.msra.mxu0 0
    %452 = vmatprep.subr.bf16.mxu0 0
    %453 = vmatpush1.bf16.msra.mxu0 0
    %454 = vmatprep.subr.bf16.mxu0 0
    %455 = vmatpush1.bf16.msra.mxu0 0
    %456 = vmatprep.subr.bf16.mxu0 0
    %457 = vmatpush1.bf16.msra.mxu0 0
    %458 = vmatprep.subr.bf16.mxu0 0
    %459 = vmatpush1.bf16.msra.mxu0 0
    %460 = vmatprep.subr.bf16.mxu0 0
    %461 = vmatpush1.bf16.msra.mxu0 0
    %462 = vmatprep.subr.bf16.mxu0 0
    %463 = vmatpush1.bf16.msra.mxu0 0
    %464 = vmatprep.subr.bf16.mxu0 0
    %465 = vmatpush1.bf16.msra.mxu0 0
    %466 = vmatprep.subr.bf16.mxu0 0
    %467 = vmatpush1.bf16.msra.mxu0 0
    %468 = vmatprep.mubr.bf16.mxu0 0
    %469 = vmatmul.mubr.bf16.gmra.mrb[0].mxu0 %v393
    %v470 = vpop.f32.mrb[0].mxu0
    %v471 = vadd.f32 %v357, %v470
    %v472 = vpop.f32.mrb[0].mxu0
    %v473 = vadd.f32 %v359, %v472
    %v474 = vpop.f32.mrb[0].mxu0
    %v475 = vpop.f32.mrb[0].mxu0
    %476 = vdwg.mxu0
    %v477 = vld [vmem:[%s2] sm:$0xf]
    %v479 = vlaneseq
    %v480 = vshrl.u32 %v479, 7
    %v481 = vsub.s32 0, %v480
    %v482 = vrot.slane %v477, %v481
    %v483 = vlaneseq
    %v484 = vshrl.u32 %v483, 7
    %v485 = vsub.s32 1, %v484
    %v486 = vrot.slane %v477, %v485
    %v487 = vlaneseq
    %v488 = vshrl.u32 %v487, 7
    %v489 = vsub.s32 2, %v488
    %v490 = vrot.slane %v477, %v489
    %v491 = vlaneseq
    %v492 = vshrl.u32 %v491, 7
    %v493 = vsub.s32 3, %v492
    %v494 = vrot.slane %v477, %v493
    %v499 = vadd.f32 %v430, %v482
    %v500 = vadd.f32 %v432, %v486
    %v501 = vadd.f32 %v471, %v490
    %v502 = vadd.f32 %v473, %v494
    %v503 = vxor.u32 %v499, 2147483648
    %v504 = vmul.f32 %v503, 1.442695
    %v505 = vpow.pop %v504
    %v506 = vadd.f32 %v505, 1.0
    %v507 = vrcp.pop %v506
    %v508 = vmul.f32 1.0, %v507
    %v509 = vxor.u32 %v500, 2147483648
    %v510 = vmul.f32 %v509, 1.442695
    %v511 = vpow.pop %v510
    %v512 = vadd.f32 %v511, 1.0
    %v513 = vrcp.pop %v512
    %v514 = vmul.f32 1.0, %v513
    %v515 = vtanh.pop %v501
    %v516 = vxor.u32 %v502, 2147483648
    %v517 = vmul.f32 %v516, 1.442695
    %v518 = vpow.pop %v517
    %v519 = vadd.f32 %v518, 1.0
    %v520 = vrcp.pop %v519
    %v521 = vmul.f32 1.0, %v520
    %v522 = vmul.f32 %v514, %v79
    %v523 = vmul.f32 %v508, %v515
    %v524 = vadd.f32 %v522, %v523
    %v525 = vtanh.pop %v524
    %v526 = vmul.f32 %v521, %v525
    %v527 = vpack.c.bf16 %v526, %v526
    %528 = vmatprep.subr.bf16.mxu0 %v218
    %529 = vmatpush1.bf16.msra.mxu0 %v217
    %530 = vmatprep.subr.bf16.mxu0 %v222
    %531 = vmatpush1.bf16.msra.mxu0 %v221
    %532 = vmatprep.subr.bf16.mxu0 %v226
    %533 = vmatpush1.bf16.msra.mxu0 %v225
    %534 = vmatprep.subr.bf16.mxu0 %v230
    %535 = vmatpush1.bf16.msra.mxu0 %v229
    %536 = vmatprep.subr.bf16.mxu0 %v234
    %537 = vmatpush1.bf16.msra.mxu0 %v233
    %538 = vmatprep.subr.bf16.mxu0 %v238
    %539 = vmatpush1.bf16.msra.mxu0 %v237
    %540 = vmatprep.subr.bf16.mxu0 %v242
    %541 = vmatpush1.bf16.msra.mxu0 %v241
    %542 = vmatprep.subr.bf16.mxu0 %v246
    %543 = vmatpush1.bf16.msra.mxu0 %v245
    %544 = vmatprep.subr.bf16.mxu0 0
    %545 = vmatpush1.bf16.msra.mxu0 0
    %546 = vmatprep.subr.bf16.mxu0 0
    %547 = vmatpush1.bf16.msra.mxu0 0
    %548 = vmatprep.subr.bf16.mxu0 0
    %549 = vmatpush1.bf16.msra.mxu0 0
    %550 = vmatprep.subr.bf16.mxu0 0
    %551 = vmatpush1.bf16.msra.mxu0 0
    %552 = vmatprep.subr.bf16.mxu0 0
    %553 = vmatpush1.bf16.msra.mxu0 0
    %554 = vmatprep.subr.bf16.mxu0 0
    %555 = vmatpush1.bf16.msra.mxu0 0
    %556 = vmatprep.subr.bf16.mxu0 0
    %557 = vmatpush1.bf16.msra.mxu0 0
    %558 = vmatprep.subr.bf16.mxu0 0
    %559 = vmatpush1.bf16.msra.mxu0 0
    %560 = vmatprep.mubr.bf16.mxu0 0
    %561 = vmatmul.mubr.bf16.gmra.mrb[0].mxu0 %v527
    %v562 = vpop.f32.mrb[0].mxu0
    %v563 = vadd.f32 0.0, %v562
    %v564 = vpop.f32.mrb[0].mxu0
    %v565 = vadd.f32 0.0, %v564
    %v566 = vpop.f32.mrb[0].mxu0
    %v567 = vpop.f32.mrb[0].mxu0
    %568 = vdwg.mxu0
    %569 = vmatprep.subr.bf16.mxu0 %v220
    %570 = vmatpush1.bf16.msra.mxu0 %v219
    %571 = vmatprep.subr.bf16.mxu0 %v224
    %572 = vmatpush1.bf16.msra.mxu0 %v223
    %573 = vmatprep.subr.bf16.mxu0 %v228
    %574 = vmatpush1.bf16.msra.mxu0 %v227
    %575 = vmatprep.subr.bf16.mxu0 %v232
    %576 = vmatpush1.bf16.msra.mxu0 %v231
    %577 = vmatprep.subr.bf16.mxu0 %v236
    %578 = vmatpush1.bf16.msra.mxu0 %v235
    %579 = vmatprep.subr.bf16.mxu0 %v240
    %580 = vmatpush1.bf16.msra.mxu0 %v239
    %581 = vmatprep.subr.bf16.mxu0 %v244
    %582 = vmatpush1.bf16.msra.mxu0 %v243
    %583 = vmatprep.subr.bf16.mxu0 %v248
    %584 = vmatpush1.bf16.msra.mxu0 %v247
    %585 = vmatprep.subr.bf16.mxu0 0
    %586 = vmatpush1.bf16.msra.mxu0 0
    %587 = vmatprep.subr.bf16.mxu0 0
    %588 = vmatpush1.bf16.msra.mxu0 0
    %589 = vmatprep.subr.bf16.mxu0 0
    %590 = vmatpush1.bf16.msra.mxu0 0
    %591 = vmatprep.subr.bf16.mxu0 0
    %592 = vmatpush1.bf16.msra.mxu0 0
    %593 = vmatprep.subr.bf16.mxu0 0
    %594 = vmatpush1.bf16.msra.mxu0 0
    %595 = vmatprep.subr.bf16.mxu0 0
    %596 = vmatpush1.bf16.msra.mxu0 0
    %597 = vmatprep.subr.bf16.mxu0 0
    %598 = vmatpush1.bf16.msra.mxu0 0
    %599 = vmatprep.subr.bf16.mxu0 0
    %600 = vmatpush1.bf16.msra.mxu0 0
    %601 = vmatprep.mubr.bf16.mxu0 0
    %602 = vmatmul.mubr.bf16.gmra.mrb[0].mxu0 %v527
    %v603 = vpop.f32.mrb[0].mxu0
    %v604 = vadd.f32 0.0, %v603
    %v605 = vpop.f32.mrb[0].mxu0
    %v606 = vadd.f32 0.0, %v605
    %v607 = vpop.f32.mrb[0].mxu0
    %v608 = vpop.f32.mrb[0].mxu0
    %609 = vdwg.mxu0
    %v610 = vrot.slane %v365, 1
    %v611 = vsel %vm368, %v366, %v610
    %v612 = vpack.c.b16 %v611, %v611
    %v614 = vsel %vm391, %v612, 0
    %616 = vmatprep.subr.bf16.mxu0 %v384
    %617 = vmatpush1.bf16.msra.mxu0 %v383
    %618 = vmatprep.subr.bf16.mxu0 0
    %619 = vmatpush1.bf16.msra.mxu0 0
    %620 = vmatprep.subr.bf16.mxu0 0
    %621 = vmatpush1.bf16.msra.mxu0 0
    %622 = vmatprep.subr.bf16.mxu0 0
    %623 = vmatpush1.bf16.msra.mxu0 0
    %624 = vmatprep.subr.bf16.mxu0 0
    %625 = vmatpush1.bf16.msra.mxu0 0
    %626 = vmatprep.subr.bf16.mxu0 0
    %627 = vmatpush1.bf16.msra.mxu0 0
    %628 = vmatprep.subr.bf16.mxu0 0
    %629 = vmatpush1.bf16.msra.mxu0 0
    %630 = vmatprep.subr.bf16.mxu0 0
    %631 = vmatpush1.bf16.msra.mxu0 0
    %632 = vmatprep.subr.bf16.mxu0 0
    %633 = vmatpush1.bf16.msra.mxu0 0
    %634 = vmatprep.subr.bf16.mxu0 0
    %635 = vmatpush1.bf16.msra.mxu0 0
    %636 = vmatprep.subr.bf16.mxu0 0
    %637 = vmatpush1.bf16.msra.mxu0 0
    %638 = vmatprep.subr.bf16.mxu0 0
    %639 = vmatpush1.bf16.msra.mxu0 0
    %640 = vmatprep.subr.bf16.mxu0 0
    %641 = vmatpush1.bf16.msra.mxu0 0
    %642 = vmatprep.subr.bf16.mxu0 0
    %643 = vmatpush1.bf16.msra.mxu0 0
    %644 = vmatprep.subr.bf16.mxu0 0
    %645 = vmatpush1.bf16.msra.mxu0 0
    %646 = vmatprep.subr.bf16.mxu0 0
    %647 = vmatpush1.bf16.msra.mxu0 0
    %648 = vmatprep.mubr.bf16.mxu0 0
    %649 = vmatmul.mubr.bf16.gmra.mrb[0].mxu0 %v614
    %v650 = vpop.f32.mrb[0].mxu0
    %v651 = vadd.f32 %v563, %v650
    %v652 = vpop.f32.mrb[0].mxu0
    %v653 = vadd.f32 %v565, %v652
    %v654 = vpop.f32.mrb[0].mxu0
    %v655 = vpop.f32.mrb[0].mxu0
    %656 = vdwg.mxu0
    %657 = vmatprep.subr.bf16.mxu0 %v386
    %658 = vmatpush1.bf16.msra.mxu0 %v385
    %659 = vmatprep.subr.bf16.mxu0 0
    %660 = vmatpush1.bf16.msra.mxu0 0
    %661 = vmatprep.subr.bf16.mxu0 0
    %662 = vmatpush1.bf16.msra.mxu0 0
    %663 = vmatprep.subr.bf16.mxu0 0
    %664 = vmatpush1.bf16.msra.mxu0 0
    %665 = vmatprep.subr.bf16.mxu0 0
    %666 = vmatpush1.bf16.msra.mxu0 0
    %667 = vmatprep.subr.bf16.mxu0 0
    %668 = vmatpush1.bf16.msra.mxu0 0
    %669 = vmatprep.subr.bf16.mxu0 0
    %670 = vmatpush1.bf16.msra.mxu0 0
    %671 = vmatprep.subr.bf16.mxu0 0
    %672 = vmatpush1.bf16.msra.mxu0 0
    %673 = vmatprep.subr.bf16.mxu0 0
    %674 = vmatpush1.bf16.msra.mxu0 0
    %675 = vmatprep.subr.bf16.mxu0 0
    %676 = vmatpush1.bf16.msra.mxu0 0
    %677 = vmatprep.subr.bf16.mxu0 0
    %678 = vmatpush1.bf16.msra.mxu0 0
    %679 = vmatprep.subr.bf16.mxu0 0
    %680 = vmatpush1.bf16.msra.mxu0 0
    %681 = vmatprep.subr.bf16.mxu0 0
    %682 = vmatpush1.bf16.msra.mxu0 0
    %683 = vmatprep.subr.bf16.mxu0 0
    %684 = vmatpush1.bf16.msra.mxu0 0
    %685 = vmatprep.subr.bf16.mxu0 0
    %686 = vmatpush1.bf16.msra.mxu0 0
    %687 = vmatprep.subr.bf16.mxu0 0
    %688 = vmatpush1.bf16.msra.mxu0 0
    %689 = vmatprep.mubr.bf16.mxu0 0
    %690 = vmatmul.mubr.bf16.gmra.mrb[0].mxu0 %v614
    %v691 = vpop.f32.mrb[0].mxu0
    %v692 = vadd.f32 %v604, %v691
    %v693 = vpop.f32.mrb[0].mxu0
    %v694 = vadd.f32 %v606, %v693
    %v695 = vpop.f32.mrb[0].mxu0
    %v696 = vpop.f32.mrb[0].mxu0
    %697 = vdwg.mxu0
    %v698 = vadd.f32 %v651, %v482
    %v699 = vadd.f32 %v653, %v486
    %v700 = vadd.f32 %v692, %v490
    %v701 = vadd.f32 %v694, %v494
    %v702 = vxor.u32 %v698, 2147483648
    %v703 = vmul.f32 %v702, 1.442695
    %v704 = vpow.pop %v703
    %v705 = vadd.f32 %v704, 1.0
    %v706 = vrcp.pop %v705
    %v707 = vmul.f32 1.0, %v706
    %v708 = vxor.u32 %v699, 2147483648
    %v709 = vmul.f32 %v708, 1.442695
    %v710 = vpow.pop %v709
    %v711 = vadd.f32 %v710, 1.0
    %v712 = vrcp.pop %v711
    %v713 = vmul.f32 1.0, %v712
    %v714 = vtanh.pop %v700
    %v715 = vxor.u32 %v701, 2147483648
    %v716 = vmul.f32 %v715, 1.442695
    %v717 = vpow.pop %v716
    %v718 = vadd.f32 %v717, 1.0
    %v719 = vrcp.pop %v718
    %v720 = vmul.f32 1.0, %v719
    %v721 = vmul.f32 %v713, %v524
    %v722 = vmul.f32 %v707, %v714
    %v723 = vadd.f32 %v721, %v722
    %v724 = vtanh.pop %v723
    %v725 = vmul.f32 %v720, %v724
    %v726 = vpack.c.bf16 %v725, %v725
    %727 = vmatprep.subr.bf16.mxu0 %v218
    %728 = vmatpush1.bf16.msra.mxu0 %v217
    %729 = vmatprep.subr.bf16.mxu0 %v222
    %730 = vmatpush1.bf16.msra.mxu0 %v221
    %731 = vmatprep.subr.bf16.mxu0 %v226
    %732 = vmatpush1.bf16.msra.mxu0 %v225
    %733 = vmatprep.subr.bf16.mxu0 %v230
    %734 = vmatpush1.bf16.msra.mxu0 %v229
    %735 = vmatprep.subr.bf16.mxu0 %v234
    %736 = vmatpush1.bf16.msra.mxu0 %v233
    %737 = vmatprep.subr.bf16.mxu0 %v238
    %738 = vmatpush1.bf16.msra.mxu0 %v237
    %739 = vmatprep.subr.bf16.mxu0 %v242
    %740 = vmatpush1.bf16.msra.mxu0 %v241
    %741 = vmatprep.subr.bf16.mxu0 %v246
    %742 = vmatpush1.bf16.msra.mxu0 %v245
    %743 = vmatprep.subr.bf16.mxu0 0
    %744 = vmatpush1.bf16.msra.mxu0 0
    %745 = vmatprep.subr.bf16.mxu0 0
    %746 = vmatpush1.bf16.msra.mxu0 0
    %747 = vmatprep.subr.bf16.mxu0 0
    %748 = vmatpush1.bf16.msra.mxu0 0
    %749 = vmatprep.subr.bf16.mxu0 0
    %750 = vmatpush1.bf16.msra.mxu0 0
    %751 = vmatprep.subr.bf16.mxu0 0
    %752 = vmatpush1.bf16.msra.mxu0 0
    %753 = vmatprep.subr.bf16.mxu0 0
    %754 = vmatpush1.bf16.msra.mxu0 0
    %755 = vmatprep.subr.bf16.mxu0 0
    %756 = vmatpush1.bf16.msra.mxu0 0
    %757 = vmatprep.subr.bf16.mxu0 0
    %758 = vmatpush1.bf16.msra.mxu0 0
    %759 = vmatprep.mubr.bf16.mxu0 0
    %760 = vmatmul.mubr.bf16.gmra.mrb[0].mxu0 %v726
    %v761 = vpop.f32.mrb[0].mxu0
    %v762 = vadd.f32 0.0, %v761
    %v763 = vpop.f32.mrb[0].mxu0
    %v764 = vadd.f32 0.0, %v763
    %v765 = vpop.f32.mrb[0].mxu0
    %v766 = vpop.f32.mrb[0].mxu0
    %767 = vdwg.mxu0
    %768 = vmatprep.subr.bf16.mxu0 %v220
    %769 = vmatpush1.bf16.msra.mxu0 %v219
    %770 = vmatprep.subr.bf16.mxu0 %v224
    %771 = vmatpush1.bf16.msra.mxu0 %v223
    %772 = vmatprep.subr.bf16.mxu0 %v228
    %773 = vmatpush1.bf16.msra.mxu0 %v227
    %774 = vmatprep.subr.bf16.mxu0 %v232
    %775 = vmatpush1.bf16.msra.mxu0 %v231
    %776 = vmatprep.subr.bf16.mxu0 %v236
    %777 = vmatpush1.bf16.msra.mxu0 %v235
    %778 = vmatprep.subr.bf16.mxu0 %v240
    %779 = vmatpush1.bf16.msra.mxu0 %v239
    %780 = vmatprep.subr.bf16.mxu0 %v244
    %781 = vmatpush1.bf16.msra.mxu0 %v243
    %782 = vmatprep.subr.bf16.mxu0 %v248
    %783 = vmatpush1.bf16.msra.mxu0 %v247
    %784 = vmatprep.subr.bf16.mxu0 0
    %785 = vmatpush1.bf16.msra.mxu0 0
    %786 = vmatprep.subr.bf16.mxu0 0
    %787 = vmatpush1.bf16.msra.mxu0 0
    %788 = vmatprep.subr.bf16.mxu0 0
    %789 = vmatpush1.bf16.msra.mxu0 0
    %790 = vmatprep.subr.bf16.mxu0 0
    %791 = vmatpush1.bf16.msra.mxu0 0
    %792 = vmatprep.subr.bf16.mxu0 0
    %793 = vmatpush1.bf16.msra.mxu0 0
    %794 = vmatprep.subr.bf16.mxu0 0
    %795 = vmatpush1.bf16.msra.mxu0 0
    %796 = vmatprep.subr.bf16.mxu0 0
    %797 = vmatpush1.bf16.msra.mxu0 0
    %798 = vmatprep.subr.bf16.mxu0 0
    %799 = vmatpush1.bf16.msra.mxu0 0
    %800 = vmatprep.mubr.bf16.mxu0 0
    %801 = vmatmul.mubr.bf16.gmra.mrb[0].mxu0 %v726
    %v802 = vpop.f32.mrb[0].mxu0
    %v803 = vadd.f32 0.0, %v802
    %v804 = vpop.f32.mrb[0].mxu0
    %v805 = vadd.f32 0.0, %v804
    %v806 = vpop.f32.mrb[0].mxu0
    %v807 = vpop.f32.mrb[0].mxu0
    %808 = vdwg.mxu0
    %v809 = vrot.slane %v365, 2
    %v810 = vrot.slane %v366, 1
    %v811 = vsel %vm368, %v810, %v809
    %v812 = vpack.c.b16 %v811, %v811
    %v814 = vsel %vm391, %v812, 0
    %816 = vmatprep.subr.bf16.mxu0 %v384
    %817 = vmatpush1.bf16.msra.mxu0 %v383
    %818 = vmatprep.subr.bf16.mxu0 0
    %819 = vmatpush1.bf16.msra.mxu0 0
    %820 = vmatprep.subr.bf16.mxu0 0
    %821 = vmatpush1.bf16.msra.mxu0 0
    %822 = vmatprep.subr.bf16.mxu0 0
    %823 = vmatpush1.bf16.msra.mxu0 0
    %824 = vmatprep.subr.bf16.mxu0 0
    %825 = vmatpush1.bf16.msra.mxu0 0
    %826 = vmatprep.subr.bf16.mxu0 0
    %827 = vmatpush1.bf16.msra.mxu0 0
    %828 = vmatprep.subr.bf16.mxu0 0
    %829 = vmatpush1.bf16.msra.mxu0 0
    %830 = vmatprep.subr.bf16.mxu0 0
    %831 = vmatpush1.bf16.msra.mxu0 0
    %832 = vmatprep.subr.bf16.mxu0 0
    %833 = vmatpush1.bf16.msra.mxu0 0
    %834 = vmatprep.subr.bf16.mxu0 0
    %835 = vmatpush1.bf16.msra.mxu0 0
    %836 = vmatprep.subr.bf16.mxu0 0
    %837 = vmatpush1.bf16.msra.mxu0 0
    %838 = vmatprep.subr.bf16.mxu0 0
    %839 = vmatpush1.bf16.msra.mxu0 0
    %840 = vmatprep.subr.bf16.mxu0 0
    %841 = vmatpush1.bf16.msra.mxu0 0
    %842 = vmatprep.subr.bf16.mxu0 0
    %843 = vmatpush1.bf16.msra.mxu0 0
    %844 = vmatprep.subr.bf16.mxu0 0
    %845 = vmatpush1.bf16.msra.mxu0 0
    %846 = vmatprep.subr.bf16.mxu0 0
    %847 = vmatpush1.bf16.msra.mxu0 0
    %848 = vmatprep.mubr.bf16.mxu0 0
    %849 = vmatmul.mubr.bf16.gmra.mrb[0].mxu0 %v814
    %v850 = vpop.f32.mrb[0].mxu0
    %v851 = vadd.f32 %v762, %v850
    %v852 = vpop.f32.mrb[0].mxu0
    %v853 = vadd.f32 %v764, %v852
    %v854 = vpop.f32.mrb[0].mxu0
    %v855 = vpop.f32.mrb[0].mxu0
    %856 = vdwg.mxu0
    %857 = vmatprep.subr.bf16.mxu0 %v386
    %858 = vmatpush1.bf16.msra.mxu0 %v385
    %859 = vmatprep.subr.bf16.mxu0 0
    %860 = vmatpush1.bf16.msra.mxu0 0
    %861 = vmatprep.subr.bf16.mxu0 0
    %862 = vmatpush1.bf16.msra.mxu0 0
    %863 = vmatprep.subr.bf16.mxu0 0
    %864 = vmatpush1.bf16.msra.mxu0 0
    %865 = vmatprep.subr.bf16.mxu0 0
    %866 = vmatpush1.bf16.msra.mxu0 0
    %867 = vmatprep.subr.bf16.mxu0 0
    %868 = vmatpush1.bf16.msra.mxu0 0
    %869 = vmatprep.subr.bf16.mxu0 0
    %870 = vmatpush1.bf16.msra.mxu0 0
    %871 = vmatprep.subr.bf16.mxu0 0
    %872 = vmatpush1.bf16.msra.mxu0 0
    %873 = vmatprep.subr.bf16.mxu0 0
    %874 = vmatpush1.bf16.msra.mxu0 0
    %875 = vmatprep.subr.bf16.mxu0 0
    %876 = vmatpush1.bf16.msra.mxu0 0
    %877 = vmatprep.subr.bf16.mxu0 0
    %878 = vmatpush1.bf16.msra.mxu0 0
    %879 = vmatprep.subr.bf16.mxu0 0
    %880 = vmatpush1.bf16.msra.mxu0 0
    %881 = vmatprep.subr.bf16.mxu0 0
    %882 = vmatpush1.bf16.msra.mxu0 0
    %883 = vmatprep.subr.bf16.mxu0 0
    %884 = vmatpush1.bf16.msra.mxu0 0
    %885 = vmatprep.subr.bf16.mxu0 0
    %886 = vmatpush1.bf16.msra.mxu0 0
    %887 = vmatprep.subr.bf16.mxu0 0
    %888 = vmatpush1.bf16.msra.mxu0 0
    %889 = vmatprep.mubr.bf16.mxu0 0
    %890 = vmatmul.mubr.bf16.gmra.mrb[0].mxu0 %v814
    %v891 = vpop.f32.mrb[0].mxu0
    %v892 = vadd.f32 %v803, %v891
    %v893 = vpop.f32.mrb[0].mxu0
    %v894 = vadd.f32 %v805, %v893
    %v895 = vpop.f32.mrb[0].mxu0
    %v896 = vpop.f32.mrb[0].mxu0
    %897 = vdwg.mxu0
    %v898 = vadd.f32 %v851, %v482
    %v899 = vadd.f32 %v853, %v486
    %v900 = vadd.f32 %v892, %v490
    %v901 = vadd.f32 %v894, %v494
    %v902 = vxor.u32 %v898, 2147483648
    %v903 = vmul.f32 %v902, 1.442695
    %v904 = vpow.pop %v903
    %v905 = vadd.f32 %v904, 1.0
    %v906 = vrcp.pop %v905
    %v907 = vmul.f32 1.0, %v906
    %v908 = vxor.u32 %v899, 2147483648
    %v909 = vmul.f32 %v908, 1.442695
    %v910 = vpow.pop %v909
    %v911 = vadd.f32 %v910, 1.0
    %v912 = vrcp.pop %v911
    %v913 = vmul.f32 1.0, %v912
    %v914 = vtanh.pop %v900
    %v915 = vxor.u32 %v901, 2147483648
    %v916 = vmul.f32 %v915, 1.442695
    %v917 = vpow.pop %v916
    %v918 = vadd.f32 %v917, 1.0
    %v919 = vrcp.pop %v918
    %v920 = vmul.f32 1.0, %v919
    %v921 = vmul.f32 %v913, %v723
    %v922 = vmul.f32 %v907, %v914
    %v923 = vadd.f32 %v921, %v922
    %v924 = vtanh.pop %v923
    %v925 = vmul.f32 %v920, %v924
    %v926 = vpack.c.bf16 %v925, %v925
    %927 = vmatprep.subr.bf16.mxu0 %v218
    %928 = vmatpush1.bf16.msra.mxu0 %v217
    %929 = vmatprep.subr.bf16.mxu0 %v222
    %930 = vmatpush1.bf16.msra.mxu0 %v221
    %931 = vmatprep.subr.bf16.mxu0 %v226
    %932 = vmatpush1.bf16.msra.mxu0 %v225
    %933 = vmatprep.subr.bf16.mxu0 %v230
    %934 = vmatpush1.bf16.msra.mxu0 %v229
    %935 = vmatprep.subr.bf16.mxu0 %v234
    %936 = vmatpush1.bf16.msra.mxu0 %v233
    %937 = vmatprep.subr.bf16.mxu0 %v238
    %938 = vmatpush1.bf16.msra.mxu0 %v237
    %939 = vmatprep.subr.bf16.mxu0 %v242
    %940 = vmatpush1.bf16.msra.mxu0 %v241
    %941 = vmatprep.subr.bf16.mxu0 %v246
    %942 = vmatpush1.bf16.msra.mxu0 %v245
    %943 = vmatprep.subr.bf16.mxu0 0
    %944 = vmatpush1.bf16.msra.mxu0 0
    %945 = vmatprep.subr.bf16.mxu0 0
    %946 = vmatpush1.bf16.msra.mxu0 0
    %947 = vmatprep.subr.bf16.mxu0 0
    %948 = vmatpush1.bf16.msra.mxu0 0
    %949 = vmatprep.subr.bf16.mxu0 0
    %950 = vmatpush1.bf16.msra.mxu0 0
    %951 = vmatprep.subr.bf16.mxu0 0
    %952 = vmatpush1.bf16.msra.mxu0 0
    %953 = vmatprep.subr.bf16.mxu0 0
    %954 = vmatpush1.bf16.msra.mxu0 0
    %955 = vmatprep.subr.bf16.mxu0 0
    %956 = vmatpush1.bf16.msra.mxu0 0
    %957 = vmatprep.subr.bf16.mxu0 0
    %958 = vmatpush1.bf16.msra.mxu0 0
    %959 = vmatprep.mubr.bf16.mxu0 0
    %960 = vmatmul.mubr.bf16.gmra.mrb[0].mxu0 %v926
    %v961 = vpop.f32.mrb[0].mxu0
    %v962 = vadd.f32 0.0, %v961
    %v963 = vpop.f32.mrb[0].mxu0
    %v964 = vadd.f32 0.0, %v963
    %v965 = vpop.f32.mrb[0].mxu0
    %v966 = vpop.f32.mrb[0].mxu0
    %967 = vdwg.mxu0
    %968 = vmatprep.subr.bf16.mxu0 %v220
    %969 = vmatpush1.bf16.msra.mxu0 %v219
    %970 = vmatprep.subr.bf16.mxu0 %v224
    %971 = vmatpush1.bf16.msra.mxu0 %v223
    %972 = vmatprep.subr.bf16.mxu0 %v228
    %973 = vmatpush1.bf16.msra.mxu0 %v227
    %974 = vmatprep.subr.bf16.mxu0 %v232
    %975 = vmatpush1.bf16.msra.mxu0 %v231
    %976 = vmatprep.subr.bf16.mxu0 %v236
    %977 = vmatpush1.bf16.msra.mxu0 %v235
    %978 = vmatprep.subr.bf16.mxu0 %v240
    %979 = vmatpush1.bf16.msra.mxu0 %v239
    %980 = vmatprep.subr.bf16.mxu0 %v244
    %981 = vmatpush1.bf16.msra.mxu0 %v243
    %982 = vmatprep.subr.bf16.mxu0 %v248
    %983 = vmatpush1.bf16.msra.mxu0 %v247
    %984 = vmatprep.subr.bf16.mxu0 0
    %985 = vmatpush1.bf16.msra.mxu0 0
    %986 = vmatprep.subr.bf16.mxu0 0
    %987 = vmatpush1.bf16.msra.mxu0 0
    %988 = vmatprep.subr.bf16.mxu0 0
    %989 = vmatpush1.bf16.msra.mxu0 0
    %990 = vmatprep.subr.bf16.mxu0 0
    %991 = vmatpush1.bf16.msra.mxu0 0
    %992 = vmatprep.subr.bf16.mxu0 0
    %993 = vmatpush1.bf16.msra.mxu0 0
    %994 = vmatprep.subr.bf16.mxu0 0
    %995 = vmatpush1.bf16.msra.mxu0 0
    %996 = vmatprep.subr.bf16.mxu0 0
    %997 = vmatpush1.bf16.msra.mxu0 0
    %998 = vmatprep.subr.bf16.mxu0 0
    %999 = vmatpush1.bf16.msra.mxu0 0
    %1000 = vmatprep.mubr.bf16.mxu0 0
    %1001 = vmatmul.mubr.bf16.gmra.mrb[0].mxu0 %v926
    %v1002 = vpop.f32.mrb[0].mxu0
    %v1003 = vadd.f32 0.0, %v1002
    %v1004 = vpop.f32.mrb[0].mxu0
    %v1005 = vadd.f32 0.0, %v1004
    %v1006 = vpop.f32.mrb[0].mxu0
    %v1007 = vpop.f32.mrb[0].mxu0
    %1008 = vdwg.mxu0
    %v1009 = vrot.slane %v365, 3
    %v1010 = vrot.slane %v366, 2
    %v1011 = vsel %vm368, %v1010, %v1009
    %v1012 = vpack.c.b16 %v1011, %v1011
    %v1014 = vsel %vm391, %v1012, 0
    %1016 = vmatprep.subr.bf16.mxu0 %v384
    %1017 = vmatpush1.bf16.msra.mxu0 %v383
    %1018 = vmatprep.subr.bf16.mxu0 0
    %1019 = vmatpush1.bf16.msra.mxu0 0
    %1020 = vmatprep.subr.bf16.mxu0 0
    %1021 = vmatpush1.bf16.msra.mxu0 0
    %1022 = vmatprep.subr.bf16.mxu0 0
    %1023 = vmatpush1.bf16.msra.mxu0 0
    %1024 = vmatprep.subr.bf16.mxu0 0
    %1025 = vmatpush1.bf16.msra.mxu0 0
    %1026 = vmatprep.subr.bf16.mxu0 0
    %1027 = vmatpush1.bf16.msra.mxu0 0
    %1028 = vmatprep.subr.bf16.mxu0 0
    %1029 = vmatpush1.bf16.msra.mxu0 0
    %1030 = vmatprep.subr.bf16.mxu0 0
    %1031 = vmatpush1.bf16.msra.mxu0 0
    %1032 = vmatprep.subr.bf16.mxu0 0
    %1033 = vmatpush1.bf16.msra.mxu0 0
    %1034 = vmatprep.subr.bf16.mxu0 0
    %1035 = vmatpush1.bf16.msra.mxu0 0
    %1036 = vmatprep.subr.bf16.mxu0 0
    %1037 = vmatpush1.bf16.msra.mxu0 0
    %1038 = vmatprep.subr.bf16.mxu0 0
    %1039 = vmatpush1.bf16.msra.mxu0 0
    %1040 = vmatprep.subr.bf16.mxu0 0
    %1041 = vmatpush1.bf16.msra.mxu0 0
    %1042 = vmatprep.subr.bf16.mxu0 0
    %1043 = vmatpush1.bf16.msra.mxu0 0
    %1044 = vmatprep.subr.bf16.mxu0 0
    %1045 = vmatpush1.bf16.msra.mxu0 0
    %1046 = vmatprep.subr.bf16.mxu0 0
    %1047 = vmatpush1.bf16.msra.mxu0 0
    %1048 = vmatprep.mubr.bf16.mxu0 0
    %1049 = vmatmul.mubr.bf16.gmra.mrb[0].mxu0 %v1014
    %v1050 = vpop.f32.mrb[0].mxu0
    %v1051 = vadd.f32 %v962, %v1050
    %v1052 = vpop.f32.mrb[0].mxu0
    %v1053 = vadd.f32 %v964, %v1052
    %v1054 = vpop.f32.mrb[0].mxu0
    %v1055 = vpop.f32.mrb[0].mxu0
    %1056 = vdwg.mxu0
    %1057 = vmatprep.subr.bf16.mxu0 %v386
    %1058 = vmatpush1.bf16.msra.mxu0 %v385
    %1059 = vmatprep.subr.bf16.mxu0 0
    %1060 = vmatpush1.bf16.msra.mxu0 0
    %1061 = vmatprep.subr.bf16.mxu0 0
    %1062 = vmatpush1.bf16.msra.mxu0 0
    %1063 = vmatprep.subr.bf16.mxu0 0
    %1064 = vmatpush1.bf16.msra.mxu0 0
    %1065 = vmatprep.subr.bf16.mxu0 0
    %1066 = vmatpush1.bf16.msra.mxu0 0
    %1067 = vmatprep.subr.bf16.mxu0 0
    %1068 = vmatpush1.bf16.msra.mxu0 0
    %1069 = vmatprep.subr.bf16.mxu0 0
    %1070 = vmatpush1.bf16.msra.mxu0 0
    %1071 = vmatprep.subr.bf16.mxu0 0
    %1072 = vmatpush1.bf16.msra.mxu0 0
    %1073 = vmatprep.subr.bf16.mxu0 0
    %1074 = vmatpush1.bf16.msra.mxu0 0
    %1075 = vmatprep.subr.bf16.mxu0 0
    %1076 = vmatpush1.bf16.msra.mxu0 0
    %1077 = vmatprep.subr.bf16.mxu0 0
    %1078 = vmatpush1.bf16.msra.mxu0 0
    %1079 = vmatprep.subr.bf16.mxu0 0
    %1080 = vmatpush1.bf16.msra.mxu0 0
    %1081 = vmatprep.subr.bf16.mxu0 0
    %1082 = vmatpush1.bf16.msra.mxu0 0
    %1083 = vmatprep.subr.bf16.mxu0 0
    %1084 = vmatpush1.bf16.msra.mxu0 0
    %1085 = vmatprep.subr.bf16.mxu0 0
    %1086 = vmatpush1.bf16.msra.mxu0 0
    %1087 = vmatprep.subr.bf16.mxu0 0
    %1088 = vmatpush1.bf16.msra.mxu0 0
    %1089 = vmatprep.mubr.bf16.mxu0 0
    %1090 = vmatmul.mubr.bf16.gmra.mrb[0].mxu0 %v1014
    %v1091 = vpop.f32.mrb[0].mxu0
    %v1092 = vadd.f32 %v1003, %v1091
    %v1093 = vpop.f32.mrb[0].mxu0
    %v1094 = vadd.f32 %v1005, %v1093
    %v1095 = vpop.f32.mrb[0].mxu0
    %v1096 = vpop.f32.mrb[0].mxu0
    %1097 = vdwg.mxu0
    %v1098 = vadd.f32 %v1051, %v482
    %v1099 = vadd.f32 %v1053, %v486
    %v1100 = vadd.f32 %v1092, %v490
    %v1101 = vadd.f32 %v1094, %v494
    %v1102 = vxor.u32 %v1098, 2147483648
    %v1103 = vmul.f32 %v1102, 1.442695
    %v1104 = vpow.pop %v1103
    %v1105 = vadd.f32 %v1104, 1.0
    %v1106 = vrcp.pop %v1105
    %v1107 = vmul.f32 1.0, %v1106
    %v1108 = vxor.u32 %v1099, 2147483648
    %v1109 = vmul.f32 %v1108, 1.442695
    %v1110 = vpow.pop %v1109
    %v1111 = vadd.f32 %v1110, 1.0
    %v1112 = vrcp.pop %v1111
    %v1113 = vmul.f32 1.0, %v1112
    %v1114 = vtanh.pop %v1100
    %v1115 = vxor.u32 %v1101, 2147483648
    %v1116 = vmul.f32 %v1115, 1.442695
    %v1117 = vpow.pop %v1116
    %v1118 = vadd.f32 %v1117, 1.0
    %v1119 = vrcp.pop %v1118
    %v1120 = vmul.f32 1.0, %v1119
    %v1121 = vmul.f32 %v1113, %v923
    %v1122 = vmul.f32 %v1107, %v1114
    %v1123 = vadd.f32 %v1121, %v1122
    %v1124 = vtanh.pop %v1123
    %v1125 = vmul.f32 %v1120, %v1124
    %v1126 = vpack.c.bf16 %v1125, %v1125
    %1127 = vmatprep.subr.bf16.mxu0 %v218
    %1128 = vmatpush1.bf16.msra.mxu0 %v217
    %1129 = vmatprep.subr.bf16.mxu0 %v222
    %1130 = vmatpush1.bf16.msra.mxu0 %v221
    %1131 = vmatprep.subr.bf16.mxu0 %v226
    %1132 = vmatpush1.bf16.msra.mxu0 %v225
    %1133 = vmatprep.subr.bf16.mxu0 %v230
    %1134 = vmatpush1.bf16.msra.mxu0 %v229
    %1135 = vmatprep.subr.bf16.mxu0 %v234
    %1136 = vmatpush1.bf16.msra.mxu0 %v233
    %1137 = vmatprep.subr.bf16.mxu0 %v238
    %1138 = vmatpush1.bf16.msra.mxu0 %v237
    %1139 = vmatprep.subr.bf16.mxu0 %v242
    %1140 = vmatpush1.bf16.msra.mxu0 %v241
    %1141 = vmatprep.subr.bf16.mxu0 %v246
    %1142 = vmatpush1.bf16.msra.mxu0 %v245
    %1143 = vmatprep.subr.bf16.mxu0 0
    %1144 = vmatpush1.bf16.msra.mxu0 0
    %1145 = vmatprep.subr.bf16.mxu0 0
    %1146 = vmatpush1.bf16.msra.mxu0 0
    %1147 = vmatprep.subr.bf16.mxu0 0
    %1148 = vmatpush1.bf16.msra.mxu0 0
    %1149 = vmatprep.subr.bf16.mxu0 0
    %1150 = vmatpush1.bf16.msra.mxu0 0
    %1151 = vmatprep.subr.bf16.mxu0 0
    %1152 = vmatpush1.bf16.msra.mxu0 0
    %1153 = vmatprep.subr.bf16.mxu0 0
    %1154 = vmatpush1.bf16.msra.mxu0 0
    %1155 = vmatprep.subr.bf16.mxu0 0
    %1156 = vmatpush1.bf16.msra.mxu0 0
    %1157 = vmatprep.subr.bf16.mxu0 0
    %1158 = vmatpush1.bf16.msra.mxu0 0
    %1159 = vmatprep.mubr.bf16.mxu0 0
    %1160 = vmatmul.mubr.bf16.gmra.mrb[0].mxu0 %v1126
    %v1161 = vpop.f32.mrb[0].mxu0
    %v1162 = vadd.f32 0.0, %v1161
    %v1163 = vpop.f32.mrb[0].mxu0
    %v1164 = vadd.f32 0.0, %v1163
    %v1165 = vpop.f32.mrb[0].mxu0
    %v1166 = vpop.f32.mrb[0].mxu0
    %1167 = vdwg.mxu0
    %1168 = vmatprep.subr.bf16.mxu0 %v220
    %1169 = vmatpush1.bf16.msra.mxu0 %v219
    %1170 = vmatprep.subr.bf16.mxu0 %v224
    %1171 = vmatpush1.bf16.msra.mxu0 %v223
    %1172 = vmatprep.subr.bf16.mxu0 %v228
    %1173 = vmatpush1.bf16.msra.mxu0 %v227
    %1174 = vmatprep.subr.bf16.mxu0 %v232
    %1175 = vmatpush1.bf16.msra.mxu0 %v231
    %1176 = vmatprep.subr.bf16.mxu0 %v236
    %1177 = vmatpush1.bf16.msra.mxu0 %v235
    %1178 = vmatprep.subr.bf16.mxu0 %v240
    %1179 = vmatpush1.bf16.msra.mxu0 %v239
    %1180 = vmatprep.subr.bf16.mxu0 %v244
    %1181 = vmatpush1.bf16.msra.mxu0 %v243
    %1182 = vmatprep.subr.bf16.mxu0 %v248
    %1183 = vmatpush1.bf16.msra.mxu0 %v247
    %1184 = vmatprep.subr.bf16.mxu0 0
    %1185 = vmatpush1.bf16.msra.mxu0 0
    %1186 = vmatprep.subr.bf16.mxu0 0
    %1187 = vmatpush1.bf16.msra.mxu0 0
    %1188 = vmatprep.subr.bf16.mxu0 0
    %1189 = vmatpush1.bf16.msra.mxu0 0
    %1190 = vmatprep.subr.bf16.mxu0 0
    %1191 = vmatpush1.bf16.msra.mxu0 0
    %1192 = vmatprep.subr.bf16.mxu0 0
    %1193 = vmatpush1.bf16.msra.mxu0 0
    %1194 = vmatprep.subr.bf16.mxu0 0
    %1195 = vmatpush1.bf16.msra.mxu0 0
    %1196 = vmatprep.subr.bf16.mxu0 0
    %1197 = vmatpush1.bf16.msra.mxu0 0
    %1198 = vmatprep.subr.bf16.mxu0 0
    %1199 = vmatpush1.bf16.msra.mxu0 0
    %1200 = vmatprep.mubr.bf16.mxu0 0
    %1201 = vmatmul.mubr.bf16.gmra.mrb[0].mxu0 %v1126
    %v1202 = vpop.f32.mrb[0].mxu0
    %v1203 = vadd.f32 0.0, %v1202
    %v1204 = vpop.f32.mrb[0].mxu0
    %v1205 = vadd.f32 0.0, %v1204
    %v1206 = vpop.f32.mrb[0].mxu0
    %v1207 = vpop.f32.mrb[0].mxu0
    %1208 = vdwg.mxu0
    %v1209 = vrot.slane %v365, 4
    %v1210 = vrot.slane %v366, 3
    %v1211 = vsel %vm368, %v1210, %v1209
    %v1212 = vpack.c.b16 %v1211, %v1211
    %v1214 = vsel %vm391, %v1212, 0
    %1216 = vmatprep.subr.bf16.mxu0 %v384
    %1217 = vmatpush1.bf16.msra.mxu0 %v383
    %1218 = vmatprep.subr.bf16.mxu0 0
    %1219 = vmatpush1.bf16.msra.mxu0 0
    %1220 = vmatprep.subr.bf16.mxu0 0
    %1221 = vmatpush1.bf16.msra.mxu0 0
    %1222 = vmatprep.subr.bf16.mxu0 0
    %1223 = vmatpush1.bf16.msra.mxu0 0
    %1224 = vmatprep.subr.bf16.mxu0 0
    %1225 = vmatpush1.bf16.msra.mxu0 0
    %1226 = vmatprep.subr.bf16.mxu0 0
    %1227 = vmatpush1.bf16.msra.mxu0 0
    %1228 = vmatprep.subr.bf16.mxu0 0
    %1229 = vmatpush1.bf16.msra.mxu0 0
    %1230 = vmatprep.subr.bf16.mxu0 0
    %1231 = vmatpush1.bf16.msra.mxu0 0
    %1232 = vmatprep.subr.bf16.mxu0 0
    %1233 = vmatpush1.bf16.msra.mxu0 0
    %1234 = vmatprep.subr.bf16.mxu0 0
    %1235 = vmatpush1.bf16.msra.mxu0 0
    %1236 = vmatprep.subr.bf16.mxu0 0
    %1237 = vmatpush1.bf16.msra.mxu0 0
    %1238 = vmatprep.subr.bf16.mxu0 0
    %1239 = vmatpush1.bf16.msra.mxu0 0
    %1240 = vmatprep.subr.bf16.mxu0 0
    %1241 = vmatpush1.bf16.msra.mxu0 0
    %1242 = vmatprep.subr.bf16.mxu0 0
    %1243 = vmatpush1.bf16.msra.mxu0 0
    %1244 = vmatprep.subr.bf16.mxu0 0
    %1245 = vmatpush1.bf16.msra.mxu0 0
    %1246 = vmatprep.subr.bf16.mxu0 0
    %1247 = vmatpush1.bf16.msra.mxu0 0
    %1248 = vmatprep.mubr.bf16.mxu0 0
    %1249 = vmatmul.mubr.bf16.gmra.mrb[0].mxu0 %v1214
    %v1250 = vpop.f32.mrb[0].mxu0
    %v1251 = vadd.f32 %v1162, %v1250
    %v1252 = vpop.f32.mrb[0].mxu0
    %v1253 = vadd.f32 %v1164, %v1252
    %v1254 = vpop.f32.mrb[0].mxu0
    %v1255 = vpop.f32.mrb[0].mxu0
    %1256 = vdwg.mxu0
    %1257 = vmatprep.subr.bf16.mxu0 %v386
    %1258 = vmatpush1.bf16.msra.mxu0 %v385
    %1259 = vmatprep.subr.bf16.mxu0 0
    %1260 = vmatpush1.bf16.msra.mxu0 0
    %1261 = vmatprep.subr.bf16.mxu0 0
    %1262 = vmatpush1.bf16.msra.mxu0 0
    %1263 = vmatprep.subr.bf16.mxu0 0
    %1264 = vmatpush1.bf16.msra.mxu0 0
    %1265 = vmatprep.subr.bf16.mxu0 0
    %1266 = vmatpush1.bf16.msra.mxu0 0
    %1267 = vmatprep.subr.bf16.mxu0 0
    %1268 = vmatpush1.bf16.msra.mxu0 0
    %1269 = vmatprep.subr.bf16.mxu0 0
    %1270 = vmatpush1.bf16.msra.mxu0 0
    %1271 = vmatprep.subr.bf16.mxu0 0
    %1272 = vmatpush1.bf16.msra.mxu0 0
    %1273 = vmatprep.subr.bf16.mxu0 0
    %1274 = vmatpush1.bf16.msra.mxu0 0
    %1275 = vmatprep.subr.bf16.mxu0 0
    %1276 = vmatpush1.bf16.msra.mxu0 0
    %1277 = vmatprep.subr.bf16.mxu0 0
    %1278 = vmatpush1.bf16.msra.mxu0 0
    %1279 = vmatprep.subr.bf16.mxu0 0
    %1280 = vmatpush1.bf16.msra.mxu0 0
    %1281 = vmatprep.subr.bf16.mxu0 0
    %1282 = vmatpush1.bf16.msra.mxu0 0
    %1283 = vmatprep.subr.bf16.mxu0 0
    %1284 = vmatpush1.bf16.msra.mxu0 0
    %1285 = vmatprep.subr.bf16.mxu0 0
    %1286 = vmatpush1.bf16.msra.mxu0 0
    %1287 = vmatprep.subr.bf16.mxu0 0
    %1288 = vmatpush1.bf16.msra.mxu0 0
    %1289 = vmatprep.mubr.bf16.mxu0 0
    %1290 = vmatmul.mubr.bf16.gmra.mrb[0].mxu0 %v1214
    %v1291 = vpop.f32.mrb[0].mxu0
    %v1292 = vadd.f32 %v1203, %v1291
    %v1293 = vpop.f32.mrb[0].mxu0
    %v1294 = vadd.f32 %v1205, %v1293
    %v1295 = vpop.f32.mrb[0].mxu0
    %v1296 = vpop.f32.mrb[0].mxu0
    %1297 = vdwg.mxu0
    %v1298 = vadd.f32 %v1251, %v482
    %v1299 = vadd.f32 %v1253, %v486
    %v1300 = vadd.f32 %v1292, %v490
    %v1301 = vadd.f32 %v1294, %v494
    %v1302 = vxor.u32 %v1298, 2147483648
    %v1303 = vmul.f32 %v1302, 1.442695
    %v1304 = vpow.pop %v1303
    %v1305 = vadd.f32 %v1304, 1.0
    %v1306 = vrcp.pop %v1305
    %v1307 = vmul.f32 1.0, %v1306
    %v1308 = vxor.u32 %v1299, 2147483648
    %v1309 = vmul.f32 %v1308, 1.442695
    %v1310 = vpow.pop %v1309
    %v1311 = vadd.f32 %v1310, 1.0
    %v1312 = vrcp.pop %v1311
    %v1313 = vmul.f32 1.0, %v1312
    %v1314 = vtanh.pop %v1300
    %v1315 = vxor.u32 %v1301, 2147483648
    %v1316 = vmul.f32 %v1315, 1.442695
    %v1317 = vpow.pop %v1316
    %v1318 = vadd.f32 %v1317, 1.0
    %v1319 = vrcp.pop %v1318
    %v1320 = vmul.f32 1.0, %v1319
    %v1321 = vmul.f32 %v1313, %v1123
    %v1322 = vmul.f32 %v1307, %v1314
    %v1323 = vadd.f32 %v1321, %v1322
    %v1324 = vtanh.pop %v1323
    %v1325 = vmul.f32 %v1320, %v1324
    %v1326 = vpack.c.bf16 %v1325, %v1325
    %1327 = vmatprep.subr.bf16.mxu0 %v218
    %1328 = vmatpush1.bf16.msra.mxu0 %v217
    %1329 = vmatprep.subr.bf16.mxu0 %v222
    %1330 = vmatpush1.bf16.msra.mxu0 %v221
    %1331 = vmatprep.subr.bf16.mxu0 %v226
    %1332 = vmatpush1.bf16.msra.mxu0 %v225
    %1333 = vmatprep.subr.bf16.mxu0 %v230
    %1334 = vmatpush1.bf16.msra.mxu0 %v229
    %1335 = vmatprep.subr.bf16.mxu0 %v234
    %1336 = vmatpush1.bf16.msra.mxu0 %v233
    %1337 = vmatprep.subr.bf16.mxu0 %v238
    %1338 = vmatpush1.bf16.msra.mxu0 %v237
    %1339 = vmatprep.subr.bf16.mxu0 %v242
    %1340 = vmatpush1.bf16.msra.mxu0 %v241
    %1341 = vmatprep.subr.bf16.mxu0 %v246
    %1342 = vmatpush1.bf16.msra.mxu0 %v245
    %1343 = vmatprep.subr.bf16.mxu0 0
    %1344 = vmatpush1.bf16.msra.mxu0 0
    %1345 = vmatprep.subr.bf16.mxu0 0
    %1346 = vmatpush1.bf16.msra.mxu0 0
    %1347 = vmatprep.subr.bf16.mxu0 0
    %1348 = vmatpush1.bf16.msra.mxu0 0
    %1349 = vmatprep.subr.bf16.mxu0 0
    %1350 = vmatpush1.bf16.msra.mxu0 0
    %1351 = vmatprep.subr.bf16.mxu0 0
    %1352 = vmatpush1.bf16.msra.mxu0 0
    %1353 = vmatprep.subr.bf16.mxu0 0
    %1354 = vmatpush1.bf16.msra.mxu0 0
    %1355 = vmatprep.subr.bf16.mxu0 0
    %1356 = vmatpush1.bf16.msra.mxu0 0
    %1357 = vmatprep.subr.bf16.mxu0 0
    %1358 = vmatpush1.bf16.msra.mxu0 0
    %1359 = vmatprep.mubr.bf16.mxu0 0
    %1360 = vmatmul.mubr.bf16.gmra.mrb[0].mxu0 %v1326
    %v1361 = vpop.f32.mrb[0].mxu0
    %v1362 = vadd.f32 0.0, %v1361
    %v1363 = vpop.f32.mrb[0].mxu0
    %v1364 = vadd.f32 0.0, %v1363
    %v1365 = vpop.f32.mrb[0].mxu0
    %v1366 = vpop.f32.mrb[0].mxu0
    %1367 = vdwg.mxu0
    %1368 = vmatprep.subr.bf16.mxu0 %v220
    %1369 = vmatpush1.bf16.msra.mxu0 %v219
    %1370 = vmatprep.subr.bf16.mxu0 %v224
    %1371 = vmatpush1.bf16.msra.mxu0 %v223
    %1372 = vmatprep.subr.bf16.mxu0 %v228
    %1373 = vmatpush1.bf16.msra.mxu0 %v227
    %1374 = vmatprep.subr.bf16.mxu0 %v232
    %1375 = vmatpush1.bf16.msra.mxu0 %v231
    %1376 = vmatprep.subr.bf16.mxu0 %v236
    %1377 = vmatpush1.bf16.msra.mxu0 %v235
    %1378 = vmatprep.subr.bf16.mxu0 %v240
    %1379 = vmatpush1.bf16.msra.mxu0 %v239
    %1380 = vmatprep.subr.bf16.mxu0 %v244
    %1381 = vmatpush1.bf16.msra.mxu0 %v243
    %1382 = vmatprep.subr.bf16.mxu0 %v248
    %1383 = vmatpush1.bf16.msra.mxu0 %v247
    %1384 = vmatprep.subr.bf16.mxu0 0
    %1385 = vmatpush1.bf16.msra.mxu0 0
    %1386 = vmatprep.subr.bf16.mxu0 0
    %1387 = vmatpush1.bf16.msra.mxu0 0
    %1388 = vmatprep.subr.bf16.mxu0 0
    %1389 = vmatpush1.bf16.msra.mxu0 0
    %1390 = vmatprep.subr.bf16.mxu0 0
    %1391 = vmatpush1.bf16.msra.mxu0 0
    %1392 = vmatprep.subr.bf16.mxu0 0
    %1393 = vmatpush1.bf16.msra.mxu0 0
    %1394 = vmatprep.subr.bf16.mxu0 0
    %1395 = vmatpush1.bf16.msra.mxu0 0
    %1396 = vmatprep.subr.bf16.mxu0 0
    %1397 = vmatpush1.bf16.msra.mxu0 0
    %1398 = vmatprep.subr.bf16.mxu0 0
    %1399 = vmatpush1.bf16.msra.mxu0 0
    %1400 = vmatprep.mubr.bf16.mxu0 0
    %1401 = vmatmul.mubr.bf16.gmra.mrb[0].mxu0 %v1326
    %v1402 = vpop.f32.mrb[0].mxu0
    %v1403 = vadd.f32 0.0, %v1402
    %v1404 = vpop.f32.mrb[0].mxu0
    %v1405 = vadd.f32 0.0, %v1404
    %v1406 = vpop.f32.mrb[0].mxu0
    %v1407 = vpop.f32.mrb[0].mxu0
    %1408 = vdwg.mxu0
    %v1409 = vrot.slane %v365, 5
    %v1410 = vrot.slane %v366, 4
    %v1411 = vsel %vm368, %v1410, %v1409
    %v1412 = vpack.c.b16 %v1411, %v1411
    %v1414 = vsel %vm391, %v1412, 0
    %1416 = vmatprep.subr.bf16.mxu0 %v384
    %1417 = vmatpush1.bf16.msra.mxu0 %v383
    %1418 = vmatprep.subr.bf16.mxu0 0
    %1419 = vmatpush1.bf16.msra.mxu0 0
    %1420 = vmatprep.subr.bf16.mxu0 0
    %1421 = vmatpush1.bf16.msra.mxu0 0
    %1422 = vmatprep.subr.bf16.mxu0 0
    %1423 = vmatpush1.bf16.msra.mxu0 0
    %1424 = vmatprep.subr.bf16.mxu0 0
    %1425 = vmatpush1.bf16.msra.mxu0 0
    %1426 = vmatprep.subr.bf16.mxu0 0
    %1427 = vmatpush1.bf16.msra.mxu0 0
    %1428 = vmatprep.subr.bf16.mxu0 0
    %1429 = vmatpush1.bf16.msra.mxu0 0
    %1430 = vmatprep.subr.bf16.mxu0 0
    %1431 = vmatpush1.bf16.msra.mxu0 0
    %1432 = vmatprep.subr.bf16.mxu0 0
    %1433 = vmatpush1.bf16.msra.mxu0 0
    %1434 = vmatprep.subr.bf16.mxu0 0
    %1435 = vmatpush1.bf16.msra.mxu0 0
    %1436 = vmatprep.subr.bf16.mxu0 0
    %1437 = vmatpush1.bf16.msra.mxu0 0
    %1438 = vmatprep.subr.bf16.mxu0 0
    %1439 = vmatpush1.bf16.msra.mxu0 0
    %1440 = vmatprep.subr.bf16.mxu0 0
    %1441 = vmatpush1.bf16.msra.mxu0 0
    %1442 = vmatprep.subr.bf16.mxu0 0
    %1443 = vmatpush1.bf16.msra.mxu0 0
    %1444 = vmatprep.subr.bf16.mxu0 0
    %1445 = vmatpush1.bf16.msra.mxu0 0
    %1446 = vmatprep.subr.bf16.mxu0 0
    %1447 = vmatpush1.bf16.msra.mxu0 0
    %1448 = vmatprep.mubr.bf16.mxu0 0
    %1449 = vmatmul.mubr.bf16.gmra.mrb[0].mxu0 %v1414
    %v1450 = vpop.f32.mrb[0].mxu0
    %v1451 = vadd.f32 %v1362, %v1450
    %v1452 = vpop.f32.mrb[0].mxu0
    %v1453 = vadd.f32 %v1364, %v1452
    %v1454 = vpop.f32.mrb[0].mxu0
    %v1455 = vpop.f32.mrb[0].mxu0
    %1456 = vdwg.mxu0
    %1457 = vmatprep.subr.bf16.mxu0 %v386
    %1458 = vmatpush1.bf16.msra.mxu0 %v385
    %1459 = vmatprep.subr.bf16.mxu0 0
    %1460 = vmatpush1.bf16.msra.mxu0 0
    %1461 = vmatprep.subr.bf16.mxu0 0
    %1462 = vmatpush1.bf16.msra.mxu0 0
    %1463 = vmatprep.subr.bf16.mxu0 0
    %1464 = vmatpush1.bf16.msra.mxu0 0
    %1465 = vmatprep.subr.bf16.mxu0 0
    %1466 = vmatpush1.bf16.msra.mxu0 0
    %1467 = vmatprep.subr.bf16.mxu0 0
    %1468 = vmatpush1.bf16.msra.mxu0 0
    %1469 = vmatprep.subr.bf16.mxu0 0
    %1470 = vmatpush1.bf16.msra.mxu0 0
    %1471 = vmatprep.subr.bf16.mxu0 0
    %1472 = vmatpush1.bf16.msra.mxu0 0
    %1473 = vmatprep.subr.bf16.mxu0 0
    %1474 = vmatpush1.bf16.msra.mxu0 0
    %1475 = vmatprep.subr.bf16.mxu0 0
    %1476 = vmatpush1.bf16.msra.mxu0 0
    %1477 = vmatprep.subr.bf16.mxu0 0
    %1478 = vmatpush1.bf16.msra.mxu0 0
    %1479 = vmatprep.subr.bf16.mxu0 0
    %1480 = vmatpush1.bf16.msra.mxu0 0
    %1481 = vmatprep.subr.bf16.mxu0 0
    %1482 = vmatpush1.bf16.msra.mxu0 0
    %1483 = vmatprep.subr.bf16.mxu0 0
    %1484 = vmatpush1.bf16.msra.mxu0 0
    %1485 = vmatprep.subr.bf16.mxu0 0
    %1486 = vmatpush1.bf16.msra.mxu0 0
    %1487 = vmatprep.subr.bf16.mxu0 0
    %1488 = vmatpush1.bf16.msra.mxu0 0
    %1489 = vmatprep.mubr.bf16.mxu0 0
    %1490 = vmatmul.mubr.bf16.gmra.mrb[0].mxu0 %v1414
    %v1491 = vpop.f32.mrb[0].mxu0
    %v1492 = vadd.f32 %v1403, %v1491
    %v1493 = vpop.f32.mrb[0].mxu0
    %v1494 = vadd.f32 %v1405, %v1493
    %v1495 = vpop.f32.mrb[0].mxu0
    %v1496 = vpop.f32.mrb[0].mxu0
    %1497 = vdwg.mxu0
    %v1498 = vadd.f32 %v1451, %v482
    %v1499 = vadd.f32 %v1453, %v486
    %v1500 = vadd.f32 %v1492, %v490
    %v1501 = vadd.f32 %v1494, %v494
    %v1502 = vxor.u32 %v1498, 2147483648
    %v1503 = vmul.f32 %v1502, 1.442695
    %v1504 = vpow.pop %v1503
    %v1505 = vadd.f32 %v1504, 1.0
    %v1506 = vrcp.pop %v1505
    %v1507 = vmul.f32 1.0, %v1506
    %v1508 = vxor.u32 %v1499, 2147483648
    %v1509 = vmul.f32 %v1508, 1.442695
    %v1510 = vpow.pop %v1509
    %v1511 = vadd.f32 %v1510, 1.0
    %v1512 = vrcp.pop %v1511
    %v1513 = vmul.f32 1.0, %v1512
    %v1514 = vtanh.pop %v1500
    %v1515 = vxor.u32 %v1501, 2147483648
    %v1516 = vmul.f32 %v1515, 1.442695
    %v1517 = vpow.pop %v1516
    %v1518 = vadd.f32 %v1517, 1.0
    %v1519 = vrcp.pop %v1518
    %v1520 = vmul.f32 1.0, %v1519
    %v1521 = vmul.f32 %v1513, %v1323
    %v1522 = vmul.f32 %v1507, %v1514
    %v1523 = vadd.f32 %v1521, %v1522
    %v1524 = vtanh.pop %v1523
    %v1525 = vmul.f32 %v1520, %v1524
    %v1526 = vpack.c.bf16 %v1525, %v1525
    %1527 = vmatprep.subr.bf16.mxu0 %v218
    %1528 = vmatpush1.bf16.msra.mxu0 %v217
    %1529 = vmatprep.subr.bf16.mxu0 %v222
    %1530 = vmatpush1.bf16.msra.mxu0 %v221
    %1531 = vmatprep.subr.bf16.mxu0 %v226
    %1532 = vmatpush1.bf16.msra.mxu0 %v225
    %1533 = vmatprep.subr.bf16.mxu0 %v230
    %1534 = vmatpush1.bf16.msra.mxu0 %v229
    %1535 = vmatprep.subr.bf16.mxu0 %v234
    %1536 = vmatpush1.bf16.msra.mxu0 %v233
    %1537 = vmatprep.subr.bf16.mxu0 %v238
    %1538 = vmatpush1.bf16.msra.mxu0 %v237
    %1539 = vmatprep.subr.bf16.mxu0 %v242
    %1540 = vmatpush1.bf16.msra.mxu0 %v241
    %1541 = vmatprep.subr.bf16.mxu0 %v246
    %1542 = vmatpush1.bf16.msra.mxu0 %v245
    %1543 = vmatprep.subr.bf16.mxu0 0
    %1544 = vmatpush1.bf16.msra.mxu0 0
    %1545 = vmatprep.subr.bf16.mxu0 0
    %1546 = vmatpush1.bf16.msra.mxu0 0
    %1547 = vmatprep.subr.bf16.mxu0 0
    %1548 = vmatpush1.bf16.msra.mxu0 0
    %1549 = vmatprep.subr.bf16.mxu0 0
    %1550 = vmatpush1.bf16.msra.mxu0 0
    %1551 = vmatprep.subr.bf16.mxu0 0
    %1552 = vmatpush1.bf16.msra.mxu0 0
    %1553 = vmatprep.subr.bf16.mxu0 0
    %1554 = vmatpush1.bf16.msra.mxu0 0
    %1555 = vmatprep.subr.bf16.mxu0 0
    %1556 = vmatpush1.bf16.msra.mxu0 0
    %1557 = vmatprep.subr.bf16.mxu0 0
    %1558 = vmatpush1.bf16.msra.mxu0 0
    %1559 = vmatprep.mubr.bf16.mxu0 0
    %1560 = vmatmul.mubr.bf16.gmra.mrb[0].mxu0 %v1526
    %v1561 = vpop.f32.mrb[0].mxu0
    %v1562 = vadd.f32 0.0, %v1561
    %v1563 = vpop.f32.mrb[0].mxu0
    %v1564 = vadd.f32 0.0, %v1563
    %v1565 = vpop.f32.mrb[0].mxu0
    %v1566 = vpop.f32.mrb[0].mxu0
    %1567 = vdwg.mxu0
    %1568 = vmatprep.subr.bf16.mxu0 %v220
    %1569 = vmatpush1.bf16.msra.mxu0 %v219
    %1570 = vmatprep.subr.bf16.mxu0 %v224
    %1571 = vmatpush1.bf16.msra.mxu0 %v223
    %1572 = vmatprep.subr.bf16.mxu0 %v228
    %1573 = vmatpush1.bf16.msra.mxu0 %v227
    %1574 = vmatprep.subr.bf16.mxu0 %v232
    %1575 = vmatpush1.bf16.msra.mxu0 %v231
    %1576 = vmatprep.subr.bf16.mxu0 %v236
    %1577 = vmatpush1.bf16.msra.mxu0 %v235
    %1578 = vmatprep.subr.bf16.mxu0 %v240
    %1579 = vmatpush1.bf16.msra.mxu0 %v239
    %1580 = vmatprep.subr.bf16.mxu0 %v244
    %1581 = vmatpush1.bf16.msra.mxu0 %v243
    %1582 = vmatprep.subr.bf16.mxu0 %v248
    %1583 = vmatpush1.bf16.msra.mxu0 %v247
    %1584 = vmatprep.subr.bf16.mxu0 0
    %1585 = vmatpush1.bf16.msra.mxu0 0
    %1586 = vmatprep.subr.bf16.mxu0 0
    %1587 = vmatpush1.bf16.msra.mxu0 0
    %1588 = vmatprep.subr.bf16.mxu0 0
    %1589 = vmatpush1.bf16.msra.mxu0 0
    %1590 = vmatprep.subr.bf16.mxu0 0
    %1591 = vmatpush1.bf16.msra.mxu0 0
    %1592 = vmatprep.subr.bf16.mxu0 0
    %1593 = vmatpush1.bf16.msra.mxu0 0
    %1594 = vmatprep.subr.bf16.mxu0 0
    %1595 = vmatpush1.bf16.msra.mxu0 0
    %1596 = vmatprep.subr.bf16.mxu0 0
    %1597 = vmatpush1.bf16.msra.mxu0 0
    %1598 = vmatprep.subr.bf16.mxu0 0
    %1599 = vmatpush1.bf16.msra.mxu0 0
    %1600 = vmatprep.mubr.bf16.mxu0 0
    %1601 = vmatmul.mubr.bf16.gmra.mrb[0].mxu0 %v1526
    %v1602 = vpop.f32.mrb[0].mxu0
    %v1603 = vadd.f32 0.0, %v1602
    %v1604 = vpop.f32.mrb[0].mxu0
    %v1605 = vadd.f32 0.0, %v1604
    %v1606 = vpop.f32.mrb[0].mxu0
    %v1607 = vpop.f32.mrb[0].mxu0
    %1608 = vdwg.mxu0
    %v1609 = vrot.slane %v365, 6
    %v1610 = vrot.slane %v366, 5
    %v1611 = vsel %vm368, %v1610, %v1609
    %v1612 = vpack.c.b16 %v1611, %v1611
    %v1614 = vsel %vm391, %v1612, 0
    %1616 = vmatprep.subr.bf16.mxu0 %v384
    %1617 = vmatpush1.bf16.msra.mxu0 %v383
    %1618 = vmatprep.subr.bf16.mxu0 0
    %1619 = vmatpush1.bf16.msra.mxu0 0
    %1620 = vmatprep.subr.bf16.mxu0 0
    %1621 = vmatpush1.bf16.msra.mxu0 0
    %1622 = vmatprep.subr.bf16.mxu0 0
    %1623 = vmatpush1.bf16.msra.mxu0 0
    %1624 = vmatprep.subr.bf16.mxu0 0
    %1625 = vmatpush1.bf16.msra.mxu0 0
    %1626 = vmatprep.subr.bf16.mxu0 0
    %1627 = vmatpush1.bf16.msra.mxu0 0
    %1628 = vmatprep.subr.bf16.mxu0 0
    %1629 = vmatpush1.bf16.msra.mxu0 0
    %1630 = vmatprep.subr.bf16.mxu0 0
    %1631 = vmatpush1.bf16.msra.mxu0 0
    %1632 = vmatprep.subr.bf16.mxu0 0
    %1633 = vmatpush1.bf16.msra.mxu0 0
    %1634 = vmatprep.subr.bf16.mxu0 0
    %1635 = vmatpush1.bf16.msra.mxu0 0
    %1636 = vmatprep.subr.bf16.mxu0 0
    %1637 = vmatpush1.bf16.msra.mxu0 0
    %1638 = vmatprep.subr.bf16.mxu0 0
    %1639 = vmatpush1.bf16.msra.mxu0 0
    %1640 = vmatprep.subr.bf16.mxu0 0
    %1641 = vmatpush1.bf16.msra.mxu0 0
    %1642 = vmatprep.subr.bf16.mxu0 0
    %1643 = vmatpush1.bf16.msra.mxu0 0
    %1644 = vmatprep.subr.bf16.mxu0 0
    %1645 = vmatpush1.bf16.msra.mxu0 0
    %1646 = vmatprep.subr.bf16.mxu0 0
    %1647 = vmatpush1.bf16.msra.mxu0 0
    %1648 = vmatprep.mubr.bf16.mxu0 0
    %1649 = vmatmul.mubr.bf16.gmra.mrb[0].mxu0 %v1614
    %v1650 = vpop.f32.mrb[0].mxu0
    %v1651 = vadd.f32 %v1562, %v1650
    %v1652 = vpop.f32.mrb[0].mxu0
    %v1653 = vadd.f32 %v1564, %v1652
    %v1654 = vpop.f32.mrb[0].mxu0
    %v1655 = vpop.f32.mrb[0].mxu0
    %1656 = vdwg.mxu0
    %1657 = vmatprep.subr.bf16.mxu0 %v386
    %1658 = vmatpush1.bf16.msra.mxu0 %v385
    %1659 = vmatprep.subr.bf16.mxu0 0
    %1660 = vmatpush1.bf16.msra.mxu0 0
    %1661 = vmatprep.subr.bf16.mxu0 0
    %1662 = vmatpush1.bf16.msra.mxu0 0
    %1663 = vmatprep.subr.bf16.mxu0 0
    %1664 = vmatpush1.bf16.msra.mxu0 0
    %1665 = vmatprep.subr.bf16.mxu0 0
    %1666 = vmatpush1.bf16.msra.mxu0 0
    %1667 = vmatprep.subr.bf16.mxu0 0
    %1668 = vmatpush1.bf16.msra.mxu0 0
    %1669 = vmatprep.subr.bf16.mxu0 0
    %1670 = vmatpush1.bf16.msra.mxu0 0
    %1671 = vmatprep.subr.bf16.mxu0 0
    %1672 = vmatpush1.bf16.msra.mxu0 0
    %1673 = vmatprep.subr.bf16.mxu0 0
    %1674 = vmatpush1.bf16.msra.mxu0 0
    %1675 = vmatprep.subr.bf16.mxu0 0
    %1676 = vmatpush1.bf16.msra.mxu0 0
    %1677 = vmatprep.subr.bf16.mxu0 0
    %1678 = vmatpush1.bf16.msra.mxu0 0
    %1679 = vmatprep.subr.bf16.mxu0 0
    %1680 = vmatpush1.bf16.msra.mxu0 0
    %1681 = vmatprep.subr.bf16.mxu0 0
    %1682 = vmatpush1.bf16.msra.mxu0 0
    %1683 = vmatprep.subr.bf16.mxu0 0
    %1684 = vmatpush1.bf16.msra.mxu0 0
    %1685 = vmatprep.subr.bf16.mxu0 0
    %1686 = vmatpush1.bf16.msra.mxu0 0
    %1687 = vmatprep.subr.bf16.mxu0 0
    %1688 = vmatpush1.bf16.msra.mxu0 0
    %1689 = vmatprep.mubr.bf16.mxu0 0
    %1690 = vmatmul.mubr.bf16.gmra.mrb[0].mxu0 %v1614
    %v1691 = vpop.f32.mrb[0].mxu0
    %v1692 = vadd.f32 %v1603, %v1691
    %v1693 = vpop.f32.mrb[0].mxu0
    %v1694 = vadd.f32 %v1605, %v1693
    %v1695 = vpop.f32.mrb[0].mxu0
    %v1696 = vpop.f32.mrb[0].mxu0
    %1697 = vdwg.mxu0
    %v1698 = vadd.f32 %v1651, %v482
    %v1699 = vadd.f32 %v1653, %v486
    %v1700 = vadd.f32 %v1692, %v490
    %v1701 = vadd.f32 %v1694, %v494
    %v1702 = vxor.u32 %v1698, 2147483648
    %v1703 = vmul.f32 %v1702, 1.442695
    %v1704 = vpow.pop %v1703
    %v1705 = vadd.f32 %v1704, 1.0
    %v1706 = vrcp.pop %v1705
    %v1707 = vmul.f32 1.0, %v1706
    %v1708 = vxor.u32 %v1699, 2147483648
    %v1709 = vmul.f32 %v1708, 1.442695
    %v1710 = vpow.pop %v1709
    %v1711 = vadd.f32 %v1710, 1.0
    %v1712 = vrcp.pop %v1711
    %v1713 = vmul.f32 1.0, %v1712
    %v1714 = vtanh.pop %v1700
    %v1715 = vxor.u32 %v1701, 2147483648
    %v1716 = vmul.f32 %v1715, 1.442695
    %v1717 = vpow.pop %v1716
    %v1718 = vadd.f32 %v1717, 1.0
    %v1719 = vrcp.pop %v1718
    %v1720 = vmul.f32 1.0, %v1719
    %v1721 = vmul.f32 %v1713, %v1523
    %v1722 = vmul.f32 %v1707, %v1714
    %v1723 = vadd.f32 %v1721, %v1722
    %v1724 = vtanh.pop %v1723
    %v1725 = vmul.f32 %v1720, %v1724
    %v1726 = vpack.c.bf16 %v1725, %v1725
    %1727 = vmatprep.subr.bf16.mxu0 %v218
    %1728 = vmatpush1.bf16.msra.mxu0 %v217
    %1729 = vmatprep.subr.bf16.mxu0 %v222
    %1730 = vmatpush1.bf16.msra.mxu0 %v221
    %1731 = vmatprep.subr.bf16.mxu0 %v226
    %1732 = vmatpush1.bf16.msra.mxu0 %v225
    %1733 = vmatprep.subr.bf16.mxu0 %v230
    %1734 = vmatpush1.bf16.msra.mxu0 %v229
    %1735 = vmatprep.subr.bf16.mxu0 %v234
    %1736 = vmatpush1.bf16.msra.mxu0 %v233
    %1737 = vmatprep.subr.bf16.mxu0 %v238
    %1738 = vmatpush1.bf16.msra.mxu0 %v237
    %1739 = vmatprep.subr.bf16.mxu0 %v242
    %1740 = vmatpush1.bf16.msra.mxu0 %v241
    %1741 = vmatprep.subr.bf16.mxu0 %v246
    %1742 = vmatpush1.bf16.msra.mxu0 %v245
    %1743 = vmatprep.subr.bf16.mxu0 0
    %1744 = vmatpush1.bf16.msra.mxu0 0
    %1745 = vmatprep.subr.bf16.mxu0 0
    %1746 = vmatpush1.bf16.msra.mxu0 0
    %1747 = vmatprep.subr.bf16.mxu0 0
    %1748 = vmatpush1.bf16.msra.mxu0 0
    %1749 = vmatprep.subr.bf16.mxu0 0
    %1750 = vmatpush1.bf16.msra.mxu0 0
    %1751 = vmatprep.subr.bf16.mxu0 0
    %1752 = vmatpush1.bf16.msra.mxu0 0
    %1753 = vmatprep.subr.bf16.mxu0 0
    %1754 = vmatpush1.bf16.msra.mxu0 0
    %1755 = vmatprep.subr.bf16.mxu0 0
    %1756 = vmatpush1.bf16.msra.mxu0 0
    %1757 = vmatprep.subr.bf16.mxu0 0
    %1758 = vmatpush1.bf16.msra.mxu0 0
    %1759 = vmatprep.mubr.bf16.mxu0 0
    %1760 = vmatmul.mubr.bf16.gmra.mrb[0].mxu0 %v1726
    %v1761 = vpop.f32.mrb[0].mxu0
    %v1762 = vadd.f32 0.0, %v1761
    %v1763 = vpop.f32.mrb[0].mxu0
    %v1764 = vadd.f32 0.0, %v1763
    %v1765 = vpop.f32.mrb[0].mxu0
    %v1766 = vpop.f32.mrb[0].mxu0
    %1767 = vdwg.mxu0
    %1768 = vmatprep.subr.bf16.mxu0 %v220
    %1769 = vmatpush1.bf16.msra.mxu0 %v219
    %1770 = vmatprep.subr.bf16.mxu0 %v224
    %1771 = vmatpush1.bf16.msra.mxu0 %v223
    %1772 = vmatprep.subr.bf16.mxu0 %v228
    %1773 = vmatpush1.bf16.msra.mxu0 %v227
    %1774 = vmatprep.subr.bf16.mxu0 %v232
    %1775 = vmatpush1.bf16.msra.mxu0 %v231
    %1776 = vmatprep.subr.bf16.mxu0 %v236
    %1777 = vmatpush1.bf16.msra.mxu0 %v235
    %1778 = vmatprep.subr.bf16.mxu0 %v240
    %1779 = vmatpush1.bf16.msra.mxu0 %v239
    %1780 = vmatprep.subr.bf16.mxu0 %v244
    %1781 = vmatpush1.bf16.msra.mxu0 %v243
    %1782 = vmatprep.subr.bf16.mxu0 %v248
    %1783 = vmatpush1.bf16.msra.mxu0 %v247
    %1784 = vmatprep.subr.bf16.mxu0 0
    %1785 = vmatpush1.bf16.msra.mxu0 0
    %1786 = vmatprep.subr.bf16.mxu0 0
    %1787 = vmatpush1.bf16.msra.mxu0 0
    %1788 = vmatprep.subr.bf16.mxu0 0
    %1789 = vmatpush1.bf16.msra.mxu0 0
    %1790 = vmatprep.subr.bf16.mxu0 0
    %1791 = vmatpush1.bf16.msra.mxu0 0
    %1792 = vmatprep.subr.bf16.mxu0 0
    %1793 = vmatpush1.bf16.msra.mxu0 0
    %1794 = vmatprep.subr.bf16.mxu0 0
    %1795 = vmatpush1.bf16.msra.mxu0 0
    %1796 = vmatprep.subr.bf16.mxu0 0
    %1797 = vmatpush1.bf16.msra.mxu0 0
    %1798 = vmatprep.subr.bf16.mxu0 0
    %1799 = vmatpush1.bf16.msra.mxu0 0
    %1800 = vmatprep.mubr.bf16.mxu0 0
    %1801 = vmatmul.mubr.bf16.gmra.mrb[0].mxu0 %v1726
    %v1802 = vpop.f32.mrb[0].mxu0
    %v1803 = vadd.f32 0.0, %v1802
    %v1804 = vpop.f32.mrb[0].mxu0
    %v1805 = vadd.f32 0.0, %v1804
    %v1806 = vpop.f32.mrb[0].mxu0
    %v1807 = vpop.f32.mrb[0].mxu0
    %1808 = vdwg.mxu0
    %v1809 = vrot.slane %v365, 7
    %v1810 = vrot.slane %v366, 6
    %v1811 = vsel %vm368, %v1810, %v1809
    %v1812 = vpack.c.b16 %v1811, %v1811
    %v1814 = vsel %vm391, %v1812, 0
    %1816 = vmatprep.subr.bf16.mxu0 %v384
    %1817 = vmatpush1.bf16.msra.mxu0 %v383
    %1818 = vmatprep.subr.bf16.mxu0 0
    %1819 = vmatpush1.bf16.msra.mxu0 0
    %1820 = vmatprep.subr.bf16.mxu0 0
    %1821 = vmatpush1.bf16.msra.mxu0 0
    %1822 = vmatprep.subr.bf16.mxu0 0
    %1823 = vmatpush1.bf16.msra.mxu0 0
    %1824 = vmatprep.subr.bf16.mxu0 0
    %1825 = vmatpush1.bf16.msra.mxu0 0
    %1826 = vmatprep.subr.bf16.mxu0 0
    %1827 = vmatpush1.bf16.msra.mxu0 0
    %1828 = vmatprep.subr.bf16.mxu0 0
    %1829 = vmatpush1.bf16.msra.mxu0 0
    %1830 = vmatprep.subr.bf16.mxu0 0
    %1831 = vmatpush1.bf16.msra.mxu0 0
    %1832 = vmatprep.subr.bf16.mxu0 0
    %1833 = vmatpush1.bf16.msra.mxu0 0
    %1834 = vmatprep.subr.bf16.mxu0 0
    %1835 = vmatpush1.bf16.msra.mxu0 0
    %1836 = vmatprep.subr.bf16.mxu0 0
    %1837 = vmatpush1.bf16.msra.mxu0 0
    %1838 = vmatprep.subr.bf16.mxu0 0
    %1839 = vmatpush1.bf16.msra.mxu0 0
    %1840 = vmatprep.subr.bf16.mxu0 0
    %1841 = vmatpush1.bf16.msra.mxu0 0
    %1842 = vmatprep.subr.bf16.mxu0 0
    %1843 = vmatpush1.bf16.msra.mxu0 0
    %1844 = vmatprep.subr.bf16.mxu0 0
    %1845 = vmatpush1.bf16.msra.mxu0 0
    %1846 = vmatprep.subr.bf16.mxu0 0
    %1847 = vmatpush1.bf16.msra.mxu0 0
    %1848 = vmatprep.mubr.bf16.mxu0 0
    %1849 = vmatmul.mubr.bf16.gmra.mrb[0].mxu0 %v1814
    %v1850 = vpop.f32.mrb[0].mxu0
    %v1851 = vadd.f32 %v1762, %v1850
    %v1852 = vpop.f32.mrb[0].mxu0
    %v1853 = vadd.f32 %v1764, %v1852
    %v1854 = vpop.f32.mrb[0].mxu0
    %v1855 = vpop.f32.mrb[0].mxu0
    %1856 = vdwg.mxu0
    %1857 = vmatprep.subr.bf16.mxu0 %v386
    %1858 = vmatpush1.bf16.msra.mxu0 %v385
    %1859 = vmatprep.subr.bf16.mxu0 0
    %1860 = vmatpush1.bf16.msra.mxu0 0
    %1861 = vmatprep.subr.bf16.mxu0 0
    %1862 = vmatpush1.bf16.msra.mxu0 0
    %1863 = vmatprep.subr.bf16.mxu0 0
    %1864 = vmatpush1.bf16.msra.mxu0 0
    %1865 = vmatprep.subr.bf16.mxu0 0
    %1866 = vmatpush1.bf16.msra.mxu0 0
    %1867 = vmatprep.subr.bf16.mxu0 0
    %1868 = vmatpush1.bf16.msra.mxu0 0
    %1869 = vmatprep.subr.bf16.mxu0 0
    %1870 = vmatpush1.bf16.msra.mxu0 0
    %1871 = vmatprep.subr.bf16.mxu0 0
    %1872 = vmatpush1.bf16.msra.mxu0 0
    %1873 = vmatprep.subr.bf16.mxu0 0
    %1874 = vmatpush1.bf16.msra.mxu0 0
    %1875 = vmatprep.subr.bf16.mxu0 0
    %1876 = vmatpush1.bf16.msra.mxu0 0
    %1877 = vmatprep.subr.bf16.mxu0 0
    %1878 = vmatpush1.bf16.msra.mxu0 0
    %1879 = vmatprep.subr.bf16.mxu0 0
    %1880 = vmatpush1.bf16.msra.mxu0 0
    %1881 = vmatprep.subr.bf16.mxu0 0
    %1882 = vmatpush1.bf16.msra.mxu0 0
    %1883 = vmatprep.subr.bf16.mxu0 0
    %1884 = vmatpush1.bf16.msra.mxu0 0
    %1885 = vmatprep.subr.bf16.mxu0 0
    %1886 = vmatpush1.bf16.msra.mxu0 0
    %1887 = vmatprep.subr.bf16.mxu0 0
    %1888 = vmatpush1.bf16.msra.mxu0 0
    %1889 = vmatprep.mubr.bf16.mxu0 0
    %1890 = vmatmul.mubr.bf16.gmra.mrb[0].mxu0 %v1814
    %v1891 = vpop.f32.mrb[0].mxu0
    %v1892 = vadd.f32 %v1803, %v1891
    %v1893 = vpop.f32.mrb[0].mxu0
    %v1894 = vadd.f32 %v1805, %v1893
    %v1895 = vpop.f32.mrb[0].mxu0
    %v1896 = vpop.f32.mrb[0].mxu0
    %1897 = vdwg.mxu0
    %v1898 = vadd.f32 %v1851, %v482
    %v1899 = vadd.f32 %v1853, %v486
    %v1900 = vadd.f32 %v1892, %v490
    %v1901 = vadd.f32 %v1894, %v494
    %v1902 = vxor.u32 %v1898, 2147483648
    %v1903 = vmul.f32 %v1902, 1.442695
    %v1904 = vpow.pop %v1903
    %v1905 = vadd.f32 %v1904, 1.0
    %v1906 = vrcp.pop %v1905
    %v1907 = vmul.f32 1.0, %v1906
    %v1908 = vxor.u32 %v1899, 2147483648
    %v1909 = vmul.f32 %v1908, 1.442695
    %v1910 = vpow.pop %v1909
    %v1911 = vadd.f32 %v1910, 1.0
    %v1912 = vrcp.pop %v1911
    %v1913 = vmul.f32 1.0, %v1912
    %v1914 = vtanh.pop %v1900
    %v1915 = vxor.u32 %v1901, 2147483648
    %v1916 = vmul.f32 %v1915, 1.442695
    %v1917 = vpow.pop %v1916
    %v1918 = vadd.f32 %v1917, 1.0
    %v1919 = vrcp.pop %v1918
    %v1920 = vmul.f32 1.0, %v1919
    %v1921 = vmul.f32 %v1913, %v1723
    %v1922 = vmul.f32 %v1907, %v1914
    %v1923 = vadd.f32 %v1921, %v1922
    %v1924 = vtanh.pop %v1923
    %v1925 = vmul.f32 %v1920, %v1924
    %v1928 = vunpack.c.l.s4 1966171168
    %v1929 = vunpack.c.0.s8 %v1928
    %v1930 = vlaneseq
    %v1931 = vshrl.u32 %v1930, 7
    %v1932 = vsub.s32 %v1929, %v1931
    %v1933 = vrot.slane %v526, %v1932
    %v1934 = vcombine.high %v1933, %v1933
    %v1936 = vunpack.c.l.s4 1966171168
    %v1937 = vunpack.c.0.s8 %v1936
    %v1938 = vlaneseq
    %v1939 = vshrl.u32 %v1938, 7
    %v1940 = vsub.s32 %v1937, %v1939
    %v1941 = vrot.slane %v1933, %v1940
    %v1943 = vunpack.c.l.s4 1966171168
    %v1944 = vunpack.c.0.s8 %v1943
    %v1945 = vlaneseq
    %v1946 = vshrl.u32 %v1945, 7
    %v1947 = vsub.s32 %v1944, %v1946
    %v1948 = vrot.slane %v1934, %v1947
    %v1953 = vunpack.c.l.s4 1966171168
    %v1954 = vunpack.c.0.s8 %v1953
    %v1955 = vlaneseq
    %v1956 = vshrl.u32 %v1955, 7
    %v1957 = vsub.s32 %v1954, %v1956
    %v1958 = vrot.slane %v725, %v1957
    %v1959 = vcombine.high %v1958, %v1958
    %v1961 = vunpack.c.l.s4 1966171168
    %v1962 = vunpack.c.0.s8 %v1961
    %v1963 = vlaneseq
    %v1964 = vshrl.u32 %v1963, 7
    %v1965 = vsub.s32 %v1962, %v1964
    %v1966 = vrot.slane %v1958, %v1965
    %v1968 = vunpack.c.l.s4 1966171168
    %v1969 = vunpack.c.0.s8 %v1968
    %v1970 = vlaneseq
    %v1971 = vshrl.u32 %v1970, 7
    %v1972 = vsub.s32 %v1969, %v1971
    %v1973 = vrot.slane %v1959, %v1972
    %v1976 = vunpack.c.l.s4 1966171168
    %v1977 = vunpack.c.0.s8 %v1976
    %v1978 = vlaneseq
    %v1979 = vshrl.u32 %v1978, 7
    %v1980 = vsub.s32 %v1977, %v1979
    %v1981 = vrot.slane %v925, %v1980
    %v1982 = vcombine.high %v1981, %v1981
    %v1984 = vunpack.c.l.s4 1966171168
    %v1985 = vunpack.c.0.s8 %v1984
    %v1986 = vlaneseq
    %v1987 = vshrl.u32 %v1986, 7
    %v1988 = vsub.s32 %v1985, %v1987
    %v1989 = vrot.slane %v1981, %v1988
    %v1991 = vunpack.c.l.s4 1966171168
    %v1992 = vunpack.c.0.s8 %v1991
    %v1993 = vlaneseq
    %v1994 = vshrl.u32 %v1993, 7
    %v1995 = vsub.s32 %v1992, %v1994
    %v1996 = vrot.slane %v1982, %v1995
    %v1999 = vunpack.c.l.s4 1966171168
    %v2000 = vunpack.c.0.s8 %v1999
    %v2001 = vlaneseq
    %v2002 = vshrl.u32 %v2001, 7
    %v2003 = vsub.s32 %v2000, %v2002
    %v2004 = vrot.slane %v1125, %v2003
    %v2005 = vcombine.high %v2004, %v2004
    %v2007 = vunpack.c.l.s4 1966171168
    %v2008 = vunpack.c.0.s8 %v2007
    %v2009 = vlaneseq
    %v2010 = vshrl.u32 %v2009, 7
    %v2011 = vsub.s32 %v2008, %v2010
    %v2012 = vrot.slane %v2004, %v2011
    %v2014 = vunpack.c.l.s4 1966171168
    %v2015 = vunpack.c.0.s8 %v2014
    %v2016 = vlaneseq
    %v2017 = vshrl.u32 %v2016, 7
    %v2018 = vsub.s32 %v2015, %v2017
    %v2019 = vrot.slane %v2005, %v2018
    %v2022 = vunpack.c.l.s4 1966171168
    %v2023 = vunpack.c.0.s8 %v2022
    %v2024 = vlaneseq
    %v2025 = vshrl.u32 %v2024, 7
    %v2026 = vsub.s32 %v2023, %v2025
    %v2027 = vrot.slane %v1325, %v2026
    %v2028 = vcombine.high %v2027, %v2027
    %v2030 = vunpack.c.l.s4 1966171168
    %v2031 = vunpack.c.0.s8 %v2030
    %v2032 = vlaneseq
    %v2033 = vshrl.u32 %v2032, 7
    %v2034 = vsub.s32 %v2031, %v2033
    %v2035 = vrot.slane %v2027, %v2034
    %v2037 = vunpack.c.l.s4 1966171168
    %v2038 = vunpack.c.0.s8 %v2037
    %v2039 = vlaneseq
    %v2040 = vshrl.u32 %v2039, 7
    %v2041 = vsub.s32 %v2038, %v2040
    %v2042 = vrot.slane %v2028, %v2041
    %v2045 = vunpack.c.l.s4 1966171168
    %v2046 = vunpack.c.0.s8 %v2045
    %v2047 = vlaneseq
    %v2048 = vshrl.u32 %v2047, 7
    %v2049 = vsub.s32 %v2046, %v2048
    %v2050 = vrot.slane %v1525, %v2049
    %v2051 = vcombine.high %v2050, %v2050
    %v2053 = vunpack.c.l.s4 1966171168
    %v2054 = vunpack.c.0.s8 %v2053
    %v2055 = vlaneseq
    %v2056 = vshrl.u32 %v2055, 7
    %v2057 = vsub.s32 %v2054, %v2056
    %v2058 = vrot.slane %v2050, %v2057
    %v2060 = vunpack.c.l.s4 1966171168
    %v2061 = vunpack.c.0.s8 %v2060
    %v2062 = vlaneseq
    %v2063 = vshrl.u32 %v2062, 7
    %v2064 = vsub.s32 %v2061, %v2063
    %v2065 = vrot.slane %v2051, %v2064
    %v2068 = vunpack.c.l.s4 1966171168
    %v2069 = vunpack.c.0.s8 %v2068
    %v2070 = vlaneseq
    %v2071 = vshrl.u32 %v2070, 7
    %v2072 = vsub.s32 %v2069, %v2071
    %v2073 = vrot.slane %v1725, %v2072
    %v2074 = vcombine.high %v2073, %v2073
    %v2076 = vunpack.c.l.s4 1966171168
    %v2077 = vunpack.c.0.s8 %v2076
    %v2078 = vlaneseq
    %v2079 = vshrl.u32 %v2078, 7
    %v2080 = vsub.s32 %v2077, %v2079
    %v2081 = vrot.slane %v2073, %v2080
    %v2083 = vunpack.c.l.s4 1966171168
    %v2084 = vunpack.c.0.s8 %v2083
    %v2085 = vlaneseq
    %v2086 = vshrl.u32 %v2085, 7
    %v2087 = vsub.s32 %v2084, %v2086
    %v2088 = vrot.slane %v2074, %v2087
    %v2091 = vunpack.c.l.s4 1966171168
    %v2092 = vunpack.c.0.s8 %v2091
    %v2093 = vlaneseq
    %v2094 = vshrl.u32 %v2093, 7
    %v2095 = vsub.s32 %v2092, %v2094
    %v2096 = vrot.slane %v1925, %v2095
    %v2097 = vcombine.high %v2096, %v2096
    %v2099 = vunpack.c.l.s4 1966171168
    %v2100 = vunpack.c.0.s8 %v2099
    %v2101 = vlaneseq
    %v2102 = vshrl.u32 %v2101, 7
    %v2103 = vsub.s32 %v2100, %v2102
    %v2104 = vrot.slane %v2096, %v2103
    %v2106 = vunpack.c.l.s4 1966171168
    %v2107 = vunpack.c.0.s8 %v2106
    %v2108 = vlaneseq
    %v2109 = vshrl.u32 %v2108, 7
    %v2110 = vsub.s32 %v2107, %v2109
    %v2111 = vrot.slane %v2097, %v2110
    %v2112 = vlaneseq
    %v2113 = vshrl.u32 %v2112, 7
    %v2114 = vsub.s32 0, %v2113
    %v2115 = vrot.slane %v1966, %v2114
    %v2116 = vlaneseq
    %v2117 = vshrl.u32 %v2116, 7
    %v2118 = vsub.s32 0, %v2117
    %v2119 = vrot.slane %v1973, %v2118
    %v2122 = vlaneseq
    %v2123 = vshrl.u32 %v2122, 7
    %v2124 = vsub.s32 0, %v2123
    %v2125 = vrot.slane %v1989, %v2124
    %v2126 = vlaneseq
    %v2127 = vshrl.u32 %v2126, 7
    %v2128 = vsub.s32 0, %v2127
    %v2129 = vrot.slane %v1996, %v2128
    %v2132 = vlaneseq
    %v2133 = vshrl.u32 %v2132, 7
    %v2134 = vsub.s32 0, %v2133
    %v2135 = vrot.slane %v2012, %v2134
    %v2136 = vlaneseq
    %v2137 = vshrl.u32 %v2136, 7
    %v2138 = vsub.s32 0, %v2137
    %v2139 = vrot.slane %v2019, %v2138
    %v2142 = vlaneseq
    %v2143 = vshrl.u32 %v2142, 7
    %v2144 = vsub.s32 0, %v2143
    %v2145 = vrot.slane %v2035, %v2144
    %v2146 = vlaneseq
    %v2147 = vshrl.u32 %v2146, 7
    %v2148 = vsub.s32 0, %v2147
    %v2149 = vrot.slane %v2042, %v2148
    %v2152 = vlaneseq
    %v2153 = vshrl.u32 %v2152, 7
    %v2154 = vsub.s32 0, %v2153
    %v2155 = vrot.slane %v2058, %v2154
    %v2156 = vlaneseq
    %v2157 = vshrl.u32 %v2156, 7
    %v2158 = vsub.s32 0, %v2157
    %v2159 = vrot.slane %v2065, %v2158
    %v2162 = vlaneseq
    %v2163 = vshrl.u32 %v2162, 7
    %v2164 = vsub.s32 0, %v2163
    %v2165 = vrot.slane %v2081, %v2164
    %v2166 = vlaneseq
    %v2167 = vshrl.u32 %v2166, 7
    %v2168 = vsub.s32 0, %v2167
    %v2169 = vrot.slane %v2088, %v2168
    %v2172 = vlaneseq
    %v2173 = vshrl.u32 %v2172, 7
    %v2174 = vsub.s32 0, %v2173
    %v2175 = vrot.slane %v2104, %v2174
    %v2176 = vlaneseq
    %v2177 = vshrl.u32 %v2176, 7
    %v2178 = vsub.s32 0, %v2177
    %v2179 = vrot.slane %v2111, %v2178
    %vm2182 = vcmask 1040384
    %v2183 = vsel %vm2182, %v1941, %v2115
    %v2184 = vsel %vm2182, %v1948, %v2119
    %vm2185 = vcmask 1041408
    %v2186 = vsel %vm2185, %v2183, %v2125
    %v2187 = vsel %vm2185, %v2184, %v2129
    %vm2188 = vcmask 1042432
    %v2189 = vsel %vm2188, %v2186, %v2135
    %v2190 = vsel %vm2188, %v2187, %v2139
    %vm2191 = vcmask 1043456
    %v2192 = vsel %vm2191, %v2189, %v2145
    %v2193 = vsel %vm2191, %v2190, %v2149
    %vm2194 = vcmask 1044480
    %v2195 = vsel %vm2194, %v2192, %v2155
    %v2196 = vsel %vm2194, %v2193, %v2159
    %vm2197 = vcmask 1045504
    %v2198 = vsel %vm2197, %v2195, %v2165
    %v2199 = vsel %vm2197, %v2196, %v2169
    %vm2200 = vcmask 1046528
    %v2201 = vsel %vm2200, %v2198, %v2175
    %v2202 = vsel %vm2200, %v2199, %v2179
    %2203 = vst [vmem:[#allocation10] sm:$0xff] %v2201
    %2204 = vst [vmem:[#allocation10 + $0x8] sm:$0xff] %v2202
    %2205 = vst [vmem:[#allocation2] sm:$0x3] %v1925
    %2206 = vst [vmem:[#allocation3] sm:$0x3] %v1923
    // Predicated region
    $region42: #{tpu_custom_call.1} parent=1 // pred_check
      %p2207 = pneg %p70
    $region43: #{tpu_custom_call.1} parent=1 // pred_check_branch
      %2209 = sbr.rel (%p2207) target = $region45
    $region44: #{tpu_custom_call.1} parent=1 // pred_region
      %2210 = vst [vmem:[#allocation11] sm:$0x3] %v1925
      %2211 = vst [vmem:[#allocation13] sm:$0x3] %v1923
    $region45: #{tpu_custom_call.1} parent=1 // pred_fallthru
      _
    // Predicated region
    $region46: #{tpu_custom_call.1} parent=1 // pred_check
      _
    $region47: #{tpu_custom_call.1} parent=1 // pred_check_branch
      %2213 = sbr.rel (0) target = $region49
    $region48: #{tpu_custom_call.1} parent=1 // pred_region
      %s2215 = ssub.s32 256, 256
      %2216 = vsyncadd [#allocation6], %s2215
      %s2217 = sshll.u32 [#allocation10], 4
      %s2218 = int_to_ptr.vmem [resolvable:$true] %s2217
      %2223 = dma.vmem_to_hbm [thread:$0]  %s2218, 256, %s6, [#allocation6], 128, 128, 8
    $region49: #{tpu_custom_call.1} parent=1 // pred_fallthru
      _
    // Predicated region
    $region50: #{tpu_custom_call.1} parent=1 // pred_check
      _
    $region51: #{tpu_custom_call.1} parent=1 // pred_check_branch
      %2225 = sbr.rel (0) target = $region53
    $region52: #{tpu_custom_call.1} parent=1 // pred_region
      %s2227 = ssub.s32 32, 32
      %2228 = vsyncadd [#allocation12], %s2227
      %s2230 = sshll.u32 [#allocation11], 4
      %s2231 = int_to_ptr.vmem [resolvable:$true] %s2230
      %2233 = dma.vmem_to_hbm [thread:$0]  %s2231, 32, %s7, [#allocation12]
    $region53: #{tpu_custom_call.1} parent=1 // pred_fallthru
      _
    // Predicated region
    $region54: #{tpu_custom_call.1} parent=1 // pred_check
      _
    $region55: #{tpu_custom_call.1} parent=1 // pred_check_branch
      %2235 = sbr.rel (0) target = $region57
    $region56: #{tpu_custom_call.1} parent=1 // pred_region
      %s2237 = ssub.s32 32, 32
      %2238 = vsyncadd [#allocation12], %s2237
      %s2240 = sshll.u32 [#allocation13], 4
      %s2241 = int_to_ptr.vmem [resolvable:$true] %s2240
      %2243 = dma.vmem_to_hbm [thread:$0]  %s2241, 32, %s8, [#allocation12]
    $region57: #{tpu_custom_call.1} parent=1 // pred_fallthru
      _
    // Predicated region
    $region58: #{tpu_custom_call.1} parent=1 // pred_check
      _
    $region59: #{tpu_custom_call.1} parent=1 // pred_check_branch
      %2245 = sbr.rel (0) target = $region61
    $region60: #{tpu_custom_call.1} parent=1 // pred_region
      %2246 = dma.done [#allocation6], 256
    $region61: #{tpu_custom_call.1} parent=1 // pred_fallthru
      _
    // Predicated region
    $region62: #{tpu_custom_call.1} parent=1 // pred_check
      _
    $region63: #{tpu_custom_call.1} parent=1 // pred_check_branch
      %2248 = sbr.rel (0) target = $region65
    $region64: #{tpu_custom_call.1} parent=1 // pred_region
      %2249 = dma.done [#allocation12], 32
    $region65: #{tpu_custom_call.1} parent=1 // pred_fallthru
      _
    // Predicated region
    $region66: #{tpu_custom_call.1} parent=1 // pred_check
      _
    $region67: #{tpu_custom_call.1} parent=1 // pred_check_branch
      %2251 = sbr.rel (0) target = $region69
    $region68: #{tpu_custom_call.1} parent=1 // pred_region
      %2252 = dma.done [#allocation12], 32
    $region69: #{tpu_custom_call.1} parent=1 // pred_fallthru
      _
    %2253 = vsyncpa [#allocation5], 1
    %2254 = vsyncpa [#allocation8], 1
    %2255 = vsyncpa [#allocation6], 1
    %2256 = vsyncpa [#allocation12], 1

</llo_original>
